<compile_context>
chip_gen: v5e
topology: v5e:2x2
jax: 0.10.0
libtpu: 0.0.40
codegen_flags: <defaults>
</compile_context>

<pallas_src>
import functools
import math

import numpy as np
import jax
import jax.numpy as jnp
from jax.experimental import pallas as pl
from jax.experimental.pallas import tpu as pltpu

DB2_HI = np.array([-0.1294095225512604, -0.2241438680420134,
                   0.8365163037378079, -0.4829629131445341], dtype=np.float64)
DB4_HI = np.array([-0.0074578275060427, -0.0233534968567756, 0.0218081502370024,
                   0.1323683939878645, -0.0197721859913265, -0.4461007108737368,
                   0.5055922216746659, -0.1629171572809054], dtype=np.float64)

NUM_WAVELETS = 16
LANE = 128
SUB = 8

GELU_P1 = 0.8413447460685429     # gelu(+1), exact erf
GELU_M1 = -0.15865525393145707   # gelu(-1), exact erf


def _round_up(n, m):
    return ((n + m - 1) // m) * m


# ----------------------------- in-kernel math -----------------------------

def _erf(x):
    # Abramowitz & Stegun 7.1.26 (|err| < 1.5e-7).  Reciprocal on the EUP
    # (approx) + one Newton step keeps the divide off the VALU.
    a1, a2, a3, a4, a5 = 0.254829592, -0.284496736, 1.421413741, -1.453152027, 1.061405429
    p = 0.3275911
    sgn = jnp.where(x >= 0.0, 1.0, -1.0)
    ax = jnp.abs(x)
    d = 1.0 + p * ax
    t = pl.reciprocal(d, approx=True)
    t = t * (2.0 - d * t)
    poly = ((((a5 * t + a4) * t + a3) * t + a2) * t + a1) * t
    return sgn * (1.0 - poly * jnp.exp(-ax * ax))


def _gelu(x):
    return 0.5 * x * (1.0 + _erf(x * 0.7071067811865476))


def _lane_mask(valid, width):
    if valid == width:
        return None
    return (jax.lax.broadcasted_iota(jnp.int32, (1, width), 1) < valid).astype(jnp.float32)


def _layer_norm(y, valid, mask, eps=1e-5):
    """LayerNorm (weight=1, bias=0, biased var) over the first `valid` lanes.

    Invariant: padded lanes of `y` are exactly zero on entry (maintained by
    zero-padded x, zero weight/bias pads and gelu(0)=0), so the sums below need
    no input masking; the output is re-masked so the invariant holds downstream.
    """
    inv_n = 1.0 / float(valid)
    mu = jnp.sum(y, axis=-1, keepdims=True) * inv_n
    d = y - mu
    if mask is not None:
        d = d * mask
    var = jnp.sum(d * d, axis=-1, keepdims=True) * inv_n
    return d * jax.lax.rsqrt(var + eps)


def _wavelet_layer(x_mm, wlp_ref, wc_ref, s_ref, out_pad, out_valid, out_mask, mm_dtype):
    # Packed constants (rows of s_ref, lanes [0:out_pad | out_pad:]):
    #   0: [bl | bp]   1: [bc_eff | 0]   2: [0 | 1/scales]   3: [0 | translations]
    #   4: [0 | haar_mask]   5: [residual bias | 0]
    blp = s_ref[0:1, :]
    bc = s_ref[1:2, :out_pad]
    inv_sc = s_ref[2:3, out_pad:]
    trans = s_ref[3:4, out_pad:]
    hmask = s_ref[4:5, out_pad:]

    # Fused direct-path + wavelet-projection matmul (bf16 operands, f32 acc).
    dw = jnp.dot(x_mm, wlp_ref[...], preferred_element_type=jnp.float32) + blp
    direct = dw[:, :out_pad]
    wi = dw[:, out_pad:]

    # Haar mother wavelet takes values in {1,-1,0}; GELU of those is a constant
    # 3-way select.  db2/db4 lanes (hmask==0, including padded lanes) contribute
    # per-output constants that were folded into `bc` host-side -> no in-kernel
    # transcendentals on the wavelet path.
    sx = (wi - trans) * inv_sc
    wout = hmask * jnp.where((sx >= 0.0) & (sx < 1.0),
                             jnp.where(sx < 0.5, GELU_P1, GELU_M1), 0.0)
    wpath = jnp.dot(wout.astype(mm_dtype), wc_ref[...],
                    preferred_element_type=jnp.float32) + bc
    # `direct + wpath` has exactly-zero padded lanes (zero weight/bias pads).
    return _layer_norm(direct + wpath, out_valid, out_mask)


def wkan_kernel(*refs, in_valid, hid_valid, out_valid,
                in_pad, hid_pad, out_pad, has_rproj, mm_dtype):
    if has_rproj:
        (x_ref, w1lp_ref, w1c_ref, s1_ref,
         w2lp_ref, w2c_ref, s2_ref, rwt_ref, o_ref) = refs
    else:
        (x_ref, w1lp_ref, w1c_ref, s1_ref,
         w2lp_ref, w2c_ref, s2_ref, o_ref) = refs
        rwt_ref = None

    # Lane masks hoisted: one constant per width per grid step.
    in_mask = _lane_mask(in_valid, in_pad)
    hid_mask = _lane_mask(hid_valid, hid_pad)
    out_mask = _lane_mask(out_valid, out_pad)

    x = x_ref[...]                                            # f32, zero-padded lanes
    xn = _layer_norm(x, in_valid, in_mask)                    # norm1
    h = _wavelet_layer(xn.astype(mm_dtype), w1lp_ref, w1c_ref, s1_ref,
                       hid_pad, hid_valid, hid_mask, mm_dtype)
    h = _gelu(h)                                              # unit GELU (erf approx)
    # dropout(p=0.1): identity in eval mode; gelu(0)=0 keeps padded lanes zero.
    h = _layer_norm(h, hid_valid, hid_mask)                   # norm2
    y = _wavelet_layer(h.astype(mm_dtype), w2lp_ref, w2c_ref, s2_ref,
                       out_pad, out_valid, out_mask, mm_dtype)

    if has_rproj:
        res = (jnp.dot(x.astype(mm_dtype), rwt_ref[...],
                       preferred_element_type=jnp.float32) + s2_ref[5:6, :out_pad])
    else:
        # in_features == out_features: reference adds x directly (no eye() matmul).
        res = x
    o_ref[...] = y + res


# ----------------------------- parameter setup -----------------------------

def _kaiming(key, out_f, in_f):
    # kaiming_normal_(mode='fan_in', nonlinearity='linear') -> std = 1/sqrt(fan_in)
    return (jax.random.normal(key, (out_f, in_f), jnp.float32)
            * np.float32(1.0 / math.sqrt(in_f)))


def _db_const(scale, translation, hi_filter, mult):
    # Parameter-only part of the db2/db4 simplified transform:
    #   feature = value * mean(sin(scaled_filter*5)) / (|scaled_filter|.sum()*0.1)
    sf = 1.0 / (1.0 + math.exp(-float(scale))) * 2.0
    shift = int(np.clip(np.round(float(translation) * mult), 0, len(hi_filter) - 1))
    scaled = np.roll(hi_filter, shift) * sf
    fsum = float(np.abs(scaled).sum())
    c = float(np.mean(np.sin(scaled * 5.0)))
    if fsum > 0:
        c = c / (fsum * 0.1)
    return c


def make_wavelet_layer_params(key, in_f, out_f, nw=NUM_WAVELETS):
    k1, k2, k3 = jax.random.split(key, 3)
    num_haar = nw // 3
    num_db2 = nw // 3
    num_db4 = nw - num_haar - num_db2
    scales = np.concatenate([np.logspace(-0.5, 0.5, num_haar),
                             np.logspace(-0.3, 0.7, num_db2),
                             np.logspace(-0.3, 0.7, num_db4)]).astype(np.float64)
    trans = np.concatenate([np.linspace(-1.5, 1.5, num_haar),
                            np.linspace(-1.5, 1.5, num_db2),
                            np.linspace(-1.5, 1.5, num_db4)]).astype(np.float64)
    hmask = np.zeros(nw, np.float32)
    hmask[:num_haar] = 1.0
    dconst = np.zeros(nw, np.float32)
    for i in range(num_haar, num_haar + num_db2):
        dconst[i] = _db_const(scales[i], trans[i], DB2_HI, 4)
    for i in range(num_haar + num_db2, nw):
        dconst[i] = _db_const(scales[i], trans[i], DB4_HI, 8)
    return {
        'Wl': _kaiming(k1, out_f, in_f), 'bl': jnp.zeros((out_f,), jnp.float32),
        'Wp': _kaiming(k2, nw, in_f), 'bp': jnp.zeros((nw,), jnp.float32),
        'Wc': _kaiming(k3, out_f, nw), 'bc': jnp.zeros((out_f,), jnp.float32),
        'scales': jnp.asarray(scales, jnp.float32),
        'trans': jnp.asarray(trans, jnp.float32),
        'hmask': jnp.asarray(hmask),
        'dconst': jnp.asarray(dconst),
    }


def make_unit_params(key, in_f, hid, out_f):
    k1, k2, k3 = jax.random.split(key, 3)
    p1 = make_wavelet_layer_params(k1, in_f, hid)
    p2 = make_wavelet_layer_params(k2, hid, out_f)
    params = {k + '1': v for k, v in p1.items()}
    params.update({k + '2': v for k, v in p2.items()})
    if in_f != out_f:                       # residual projection only when shapes differ
        params['rW'] = _kaiming(k3, out_f, in_f)
        params['rb'] = jnp.zeros((out_f,), jnp.float32)
    return params


# ----------------------- pure-JAX reference / prepass -----------------------

def _ln_ref(y, eps=1e-5):
    mu = jnp.mean(y, axis=-1, keepdims=True)
    var = jnp.mean((y - mu) ** 2, axis=-1, keepdims=True)
    return (y - mu) * jax.lax.rsqrt(var + eps)


def _haar_ref(sx):
    return jnp.where((sx >= 0.0) & (sx < 1.0), jnp.where(sx < 0.5, 1.0, -1.0), 0.0)


def _wavelet_layer_ref(x, p, suf, dbw):
    direct = x @ p['Wl' + suf].T + p['bl' + suf]
    wi = x @ p['Wp' + suf].T + p['bp' + suf]
    sx = (wi - p['trans' + suf]) / p['scales' + suf]
    wout = p['hmask' + suf] * _haar_ref(sx) + (1.0 - p['hmask' + suf]) * dbw
    wout = jax.nn.gelu(wout, approximate=False)
    return _ln_ref(direct + wout @ p['Wc' + suf].T + p['bc' + suf])


def _db_values(x, p):
    """db2/db4 'value' constants (reference: mean of the first min(4,B) rows of
    each wavelet-projection column).  Tiny plain-JAX prepass with exact-erf GELU
    so the batch grid can be tiled without changing semantics."""
    n4 = min(4, x.shape[0])
    xn = _ln_ref(x[:n4])                               # per-row LN -> exact restriction
    wi1 = xn @ p['Wp1'].T + p['bp1']
    dbw1 = jnp.mean(wi1, axis=0) * p['dconst1']
    h = _wavelet_layer_ref(xn, p, '1', dbw1)
    h = jax.nn.gelu(h, approximate=False)              # unit GELU; dropout = identity
    h = _ln_ref(h)                                     # norm2
    wi2 = h @ p['Wp2'].T + p['bp2']
    dbw2 = jnp.mean(wi2, axis=0) * p['dconst2']
    return dbw1, dbw2


def wavelet_kan_unit_ref(x, p):
    """Pure-JAX (f32, exact erf) reference of WaveletKANUnit.forward in eval mode."""
    dbw1, dbw2 = _db_values(x, p)
    xn = _ln_ref(x)
    h = jax.nn.gelu(_wavelet_layer_ref(xn, p, '1', dbw1), approximate=False)
    h = _ln_ref(h)
    y = _wavelet_layer_ref(h, p, '2', dbw2)
    res = x @ p['rW'].T + p['rb'] if 'rW' in p else x
    return y + res


# ------------------------------- entry point -------------------------------

def _pad2(a, rows, cols):
    return jnp.pad(a, ((0, rows - a.shape[0]), (0, cols - a.shape[1])))


def wavelet_kan_unit(x, params, *, tb_max=1024, matmul_dtype=jnp.bfloat16,
                     single_buffer_weights=True):
    B, in_f = x.shape
    hid = params['Wl1'].shape[0]
    out_f = params['Wl2'].shape[0]
    nw = params['Wp1'].shape[0]
    has_rproj = 'rW' in params

    in_pad = _round_up(in_f, LANE)
    hid_pad = _round_up(hid, LANE)
    out_pad = _round_up(out_f, LANE)
    nw_pad = _round_up(nw, LANE)
    cw1, cw2 = hid_pad + nw_pad, out_pad + nw_pad
    wdt = jnp.dtype(matmul_dtype)

    # db2/db4 constants (data-dependent) + constant-fold gelu(dbw) @ Wc^T into bc.
    dbw1, dbw2 = _db_values(x, params)
    bc1 = params['bc1'] + params['Wc1'] @ (jax.nn.gelu(dbw1, approximate=False)
                                           * (1.0 - params['hmask1']))
    bc2 = params['bc2'] + params['Wc2'] @ (jax.nn.gelu(dbw2, approximate=False)
                                           * (1.0 - params['hmask2']))

    # Lane-dense packed weights, pre-transposed to [in, out]; Wl|Wp fused.
    W1lp = jnp.concatenate([_pad2(params['Wl1'].T, in_pad, hid_pad),
                            _pad2(params['Wp1'].T, in_pad, nw_pad)], axis=1).astype(wdt)
    W1c = _pad2(params['Wc1'].T, nw_pad, hid_pad).astype(wdt)
    W2lp = jnp.concatenate([_pad2(params['Wl2'].T, hid_pad, out_pad),
                            _pad2(params['Wp2'].T, hid_pad, nw_pad)], axis=1).astype(wdt)
    W2c = _pad2(params['Wc2'].T, nw_pad, out_pad).astype(wdt)
    rWT = _pad2(params['rW'].T, in_pad, out_pad).astype(wdt) if has_rproj else None

    def small_pack(cw, split, bl, bp, bc, inv_sc, trans, hmask, rb=None):
        s = jnp.zeros((8, cw), jnp.float32)
        s = s.at[0, :bl.shape[0]].set(bl).at[0, split:split + bp.shape[0]].set(bp)
        s = s.at[1, :bc.shape[0]].set(bc)
        s = s.at[2, split:split + inv_sc.shape[0]].set(inv_sc)
        s = s.at[3, split:split + trans.shape[0]].set(trans)
        s = s.at[4, split:split + hmask.shape[0]].set(hmask)
        if rb is not None:
            s = s.at[5, :rb.shape[0]].set(rb)
        return s

    S1 = small_pack(cw1, hid_pad, params['bl1'], params['bp1'], bc1,
                    1.0 / params['scales1'], params['trans1'], params['hmask1'])
    S2 = small_pack(cw2, out_pad, params['bl2'], params['bp2'], bc2,
                    1.0 / params['scales2'], params['trans2'], params['hmask2'],
                    rb=params['rb'] if has_rproj else None)

    # ------------------- VMEM budget -> batch tile sizing --------------------
    try:
        vmem_cap = int(pltpu.get_tpu_info().vmem_capacity_bytes)
    except Exception:
        vmem_cap = 64 * 1024 * 1024            # conservative (v7x per-core VMEM)
    vmem_limit = max(32 * 1024 * 1024,
                     min(100 * 1024 * 1024, (vmem_cap * 3) // 4))

    weight_bufs = 1 if single_buffer_weights else 2
    weight_bytes_one = (wdt.itemsize * (in_pad * cw1 + nw_pad * hid_pad
                                        + hid_pad * cw2 + nw_pad * out_pad
                                        + (in_pad * out_pad if has_rproj else 0))
                        + 4 * 8 * (cw1 + cw2))
    weight_bytes = weight_bufs * weight_bytes_one
    # double-buffered x/out tiles + f32 in-kernel temporaries per batch row
    per_row_bytes = 4 * (2 * in_pad + 2 * out_pad + 2 * (cw1 + cw2) + 2 * hid_pad + in_pad)
    tb_fit = max(8, int((vmem_limit * 6 // 10 - weight_bytes)
                        // max(per_row_bytes, 1)) // 8 * 8)
    tb_cap = max(8, min(max(8, int(tb_max) // 8 * 8), tb_fit))

    # Balanced ragged-batch tiling: minimal #tiles, even tile size (mult of 8).
    n_tiles = max(1, -(-B // tb_cap))
    tb_eff = _round_up(-(-B // n_tiles), SUB)
    b_pad = n_tiles * tb_eff
    x_pad = _pad2(x.astype(jnp.float32), b_pad, in_pad)

    kernel = functools.partial(
        wkan_kernel, in_valid=in_f, hid_valid=hid, out_valid=out_f,
        in_pad=in_pad, hid_pad=hid_pad, out_pad=out_pad,
        has_rproj=has_rproj, mm_dtype=wdt)

    flops = 2 * b_pad * (in_pad * cw1 + nw_pad * hid_pad + hid_pad * cw2
                         + nw_pad * out_pad + (in_pad * out_pad if has_rproj else 0))
    transcendentals = 2 * b_pad * hid_pad          # unit GELU only (exp + reciprocal)
    bytes_accessed = 4 * b_pad * (in_pad + out_pad) + weight_bytes_one

    def run(weight_bufs_n):
        def wspec(a):
            if weight_bufs_n == 1:
                return pl.BlockSpec(a.shape, lambda i: (0, 0),
                                    pipeline_mode=pl.Buffered(1))
            return pl.BlockSpec(a.shape, lambda i: (0, 0))
        in_specs = [pl.BlockSpec((tb_eff, in_pad), lambda i: (i, 0)),
                    wspec(W1lp), wspec(W1c), wspec(S1),
                    wspec(W2lp), wspec(W2c), wspec(S2)]
        operands = [x_pad, W1lp, W1c, S1, W2lp, W2c, S2]
        if has_rproj:
            in_specs.append(wspec(rWT))
            operands.append(rWT)
        return pl.pallas_call(
            kernel,
            out_shape=jax.ShapeDtypeStruct((b_pad, out_pad), jnp.float32),
            grid=(n_tiles,),
            in_specs=in_specs,
            out_specs=pl.BlockSpec((tb_eff, out_pad), lambda i: (i, 0)),
            compiler_params=pltpu.CompilerParams(
                dimension_semantics=("parallel",),
                vmem_limit_bytes=int(vmem_limit)),
            cost_estimate=pl.CostEstimate(flops=int(flops),
                                          transcendentals=int(transcendentals),
                                          bytes_accessed=int(bytes_accessed)),
        )(*operands)

    if single_buffer_weights:
        try:
            out = run(1)
        except Exception:
            # Older jax without BlockSpec pipeline_mode support: default buffering.
            out = run(2)
    else:
        out = run(2)
    return out[:B, :out_f]


if __name__ == "__main__":
    key = jax.random.PRNGKey(0)
    kx1, kp1, kx2, kp2 = jax.random.split(key, 4)

    # Config A: in_features != out_features (projected residual), single tile.
    B1, IN1, HID1, OUT1 = 8, 16, 32, 24
    x1 = jax.random.normal(kx1, (B1, IN1), jnp.float32)
    p1 = make_unit_params(kp1, IN1, HID1, OUT1)
    y1 = wavelet_kan_unit(x1, p1)                                 # default bf16 matmuls
    y1_f32 = wavelet_kan_unit(x1, p1, matmul_dtype=jnp.float32)   # exact path
    r1 = wavelet_kan_unit_ref(x1, p1)
    jax.block_until_ready((y1, y1_f32, r1))
    assert y1.shape == (B1, OUT1) and y1.dtype == jnp.float32
    assert bool(jnp.all(jnp.isfinite(y1)))
    # Median error is robust to rare Haar-threshold flips from matmul rounding
    # but still catches structural bugs (which corrupt the bulk of elements).
    assert float(jnp.median(jnp.abs(y1_f32 - r1))) < 5e-2
    assert float(jnp.median(jnp.abs(y1 - r1))) < 1e-1

    # Config B: in_features == out_features (identity residual), multi-tile grid.
    B2, IN2, HID2, OUT2 = 64, 24, 48, 24
    x2 = jax.random.normal(kx2, (B2, IN2), jnp.float32)
    p2 = make_unit_params(kp2, IN2, HID2, OUT2)
    y2 = wavelet_kan_unit(x2, p2, tb_max=32, matmul_dtype=jnp.float32)
    r2 = wavelet_kan_unit_ref(x2, p2)
    jax.block_until_ready((y2, r2))
    assert y2.shape == (B2, OUT2)
    assert bool(jnp.all(jnp.isfinite(y2)))
    assert float(jnp.median(jnp.abs(y2 - r2))) < 5e-2

    print("KERNEL_OK")
</pallas_src>

<mosaic_0001>
module attributes {stable_mosaic.version = 11 : i64} {
  func.func @wkan_kernel(%arg0: i32, %arg1: memref<8x128xf32, #tpu.memory_space<vmem>>, %arg2: memref<128x256xbf16, #tpu.memory_space<vmem>>, %arg3: memref<128x128xbf16, #tpu.memory_space<vmem>>, %arg4: memref<8x256xf32, #tpu.memory_space<vmem>>, %arg5: memref<128x256xbf16, #tpu.memory_space<vmem>>, %arg6: memref<128x128xbf16, #tpu.memory_space<vmem>>, %arg7: memref<8x256xf32, #tpu.memory_space<vmem>>, %arg8: memref<128x128xbf16, #tpu.memory_space<vmem>>, %arg9: memref<8x128xf32, #tpu.memory_space<vmem>>) attributes {dimension_semantics = [#tpu.dimension_semantics<parallel>], iteration_bounds = array<i64: 1>, scalar_prefetch = 0 : i64, scratch_operands = 0 : i64, tpu.core_type = #tpu.core_type<tc>, window_params = [{transform_indices = @transform_0, window_bounds = array<i64: 8, 128>}, {pipeline_mode = #tpu.pipeline_mode<synchronous>, transform_indices = @transform_1, window_bounds = array<i64: 128, 256>}, {pipeline_mode = #tpu.pipeline_mode<synchronous>, transform_indices = @transform_2, window_bounds = array<i64: 128, 128>}, {pipeline_mode = #tpu.pipeline_mode<synchronous>, transform_indices = @transform_3, window_bounds = array<i64: 8, 256>}, {pipeline_mode = #tpu.pipeline_mode<synchronous>, transform_indices = @transform_4, window_bounds = array<i64: 128, 256>}, {pipeline_mode = #tpu.pipeline_mode<synchronous>, transform_indices = @transform_5, window_bounds = array<i64: 128, 128>}, {pipeline_mode = #tpu.pipeline_mode<synchronous>, transform_indices = @transform_6, window_bounds = array<i64: 8, 256>}, {pipeline_mode = #tpu.pipeline_mode<synchronous>, transform_indices = @transform_7, window_bounds = array<i64: 128, 128>}, {transform_indices = @transform_8, window_bounds = array<i64: 8, 128>}]} {
    %0 = tpu.iota {dimensions = array<i32: 1>} : vector<1x128xi32>
    %c16_i32 = arith.constant 16 : i32
    %1 = vector.broadcast %c16_i32 : i32 to vector<1x128xi32>
    %2 = arith.cmpi slt, %0, %1 : vector<1x128xi32>
    %3 = arith.extui %2 : vector<1x128xi1> to vector<1x128xi32>
    %4 = arith.sitofp %3 : vector<1x128xi32> to vector<1x128xf32>
    %5 = tpu.iota {dimensions = array<i32: 1>} : vector<1x128xi32>
    %c32_i32 = arith.constant 32 : i32
    %6 = vector.broadcast %c32_i32 : i32 to vector<1x128xi32>
    %7 = arith.cmpi slt, %5, %6 : vector<1x128xi32>
    %8 = arith.extui %7 : vector<1x128xi1> to vector<1x128xi32>
    %9 = arith.sitofp %8 : vector<1x128xi32> to vector<1x128xf32>
    %10 = tpu.iota {dimensions = array<i32: 1>} : vector<1x128xi32>
    %c24_i32 = arith.constant 24 : i32
    %11 = vector.broadcast %c24_i32 : i32 to vector<1x128xi32>
    %12 = arith.cmpi slt, %10, %11 : vector<1x128xi32>
    %13 = arith.extui %12 : vector<1x128xi1> to vector<1x128xi32>
    %14 = arith.sitofp %13 : vector<1x128xi32> to vector<1x128xf32>
    %c0 = arith.constant 0 : index
    %c0_0 = arith.constant 0 : index
    %15 = vector.load %arg1[%c0, %c0_0] : memref<8x128xf32, #tpu.memory_space<vmem>>, vector<8x128xf32>
    %cst = arith.constant dense<0.000000e+00> : vector<8xf32>
    %16 = vector.multi_reduction <add>, %15, %cst [1] : vector<8x128xf32> to vector<8xf32>
    %17 = vector.shape_cast %16 : vector<8xf32> to vector<8x1xf32>
    %cst_1 = arith.constant 6.250000e-02 : f32
    %18 = vector.broadcast %cst_1 : f32 to vector<8x1xf32>
    %19 = arith.mulf %17, %18 : vector<8x1xf32>
    %20 = vector.broadcast %19 : vector<8x1xf32> to vector<8x128xf32>
    %21 = arith.subf %15, %20 : vector<8x128xf32>
    %22 = vector.broadcast %4 : vector<1x128xf32> to vector<8x128xf32>
    %23 = arith.mulf %21, %22 : vector<8x128xf32>
    %24 = arith.mulf %23, %23 : vector<8x128xf32>
    %cst_2 = arith.constant dense<0.000000e+00> : vector<8xf32>
    %25 = vector.multi_reduction <add>, %24, %cst_2 [1] : vector<8x128xf32> to vector<8xf32>
    %26 = vector.shape_cast %25 : vector<8xf32> to vector<8x1xf32>
    %cst_3 = arith.constant 6.250000e-02 : f32
    %27 = vector.broadcast %cst_3 : f32 to vector<8x1xf32>
    %28 = arith.mulf %26, %27 : vector<8x1xf32>
    %cst_4 = arith.constant 9.99999974E-6 : f32
    %29 = vector.broadcast %cst_4 : f32 to vector<8x1xf32>
    %30 = arith.addf %28, %29 : vector<8x1xf32>
    %31 = math.rsqrt %30 : vector<8x1xf32>
    %32 = vector.broadcast %31 : vector<8x1xf32> to vector<8x128xf32>
    %33 = arith.mulf %23, %32 : vector<8x128xf32>
    %34 = arith.truncf %33 : vector<8x128xf32> to vector<8x128xbf16>
    %c0_5 = arith.constant 0 : index
    %c0_6 = arith.constant 0 : index
    %35 = vector.load %arg4[%c0_5, %c0_6] : memref<8x256xf32, #tpu.memory_space<vmem>>, vector<1x256xf32>
    %c1 = arith.constant 1 : index
    %c0_7 = arith.constant 0 : index
    %36 = vector.load %arg4[%c1, %c0_7] : memref<8x256xf32, #tpu.memory_space<vmem>>, vector<1x128xf32>
    %c2 = arith.constant 2 : index
    %c128 = arith.constant 128 : index
    %37 = vector.load %arg4[%c2, %c128] : memref<8x256xf32, #tpu.memory_space<vmem>>, vector<1x128xf32>
    %c3 = arith.constant 3 : index
    %c128_8 = arith.constant 128 : index
    %38 = vector.load %arg4[%c3, %c128_8] : memref<8x256xf32, #tpu.memory_space<vmem>>, vector<1x128xf32>
    %c4 = arith.constant 4 : index
    %c128_9 = arith.constant 128 : index
    %39 = vector.load %arg4[%c4, %c128_9] : memref<8x256xf32, #tpu.memory_space<vmem>>, vector<1x128xf32>
    %c0_10 = arith.constant 0 : index
    %c0_11 = arith.constant 0 : index
    %40 = vector.load %arg2[%c0_10, %c0_11] : memref<128x256xbf16, #tpu.memory_space<vmem>>, vector<128x256xbf16>
    %cst_12 = arith.constant dense<0.000000e+00> : vector<8x256xf32>
    %41 = tpu.matmul %34, %40, %cst_12 {dimension_numbers = #tpu.dot_dimension_numbers<[1], [0], [0], [1], [0, 0, 1, 1], [], []>} : vector<8x128xbf16>, vector<128x256xbf16>, vector<8x256xf32> -> vector<8x256xf32>
    %42 = vector.broadcast %35 : vector<1x256xf32> to vector<8x256xf32>
    %43 = arith.addf %41, %42 : vector<8x256xf32>
    %44 = vector.extract_strided_slice %43 {offsets = [0, 0], sizes = [8, 128], strides = [1, 1]} : vector<8x256xf32> to vector<8x128xf32>
    %45 = vector.extract_strided_slice %43 {offsets = [0, 128], sizes = [8, 128], strides = [1, 1]} : vector<8x256xf32> to vector<8x128xf32>
    %46 = vector.broadcast %38 : vector<1x128xf32> to vector<8x128xf32>
    %47 = arith.subf %45, %46 : vector<8x128xf32>
    %48 = vector.broadcast %37 : vector<1x128xf32> to vector<8x128xf32>
    %49 = arith.mulf %47, %48 : vector<8x128xf32>
    %cst_13 = arith.constant 0.000000e+00 : f32
    %50 = vector.broadcast %cst_13 : f32 to vector<8x128xf32>
    %51 = arith.cmpf oge, %49, %50 : vector<8x128xf32>
    %cst_14 = arith.constant 1.000000e+00 : f32
    %52 = vector.broadcast %cst_14 : f32 to vector<8x128xf32>
    %53 = arith.cmpf olt, %49, %52 : vector<8x128xf32>
    %54 = arith.andi %51, %53 : vector<8x128xi1>
    %cst_15 = arith.constant 5.000000e-01 : f32
    %55 = vector.broadcast %cst_15 : f32 to vector<8x128xf32>
    %56 = arith.cmpf olt, %49, %55 : vector<8x128xf32>
    %cst_16 = arith.constant 0.841344773 : f32
    %cst_17 = arith.constant -0.158655256 : f32
    %57 = vector.broadcast %cst_16 : f32 to vector<8x128xf32>
    %58 = vector.broadcast %cst_17 : f32 to vector<8x128xf32>
    %59 = arith.select %56, %57, %58 : vector<8x128xi1>, vector<8x128xf32>
    %cst_18 = arith.constant 0.000000e+00 : f32
    %60 = vector.broadcast %cst_18 : f32 to vector<8x128xf32>
    %61 = arith.select %54, %59, %60 : vector<8x128xi1>, vector<8x128xf32>
    %62 = vector.broadcast %39 : vector<1x128xf32> to vector<8x128xf32>
    %63 = arith.mulf %62, %61 : vector<8x128xf32>
    %64 = arith.truncf %63 : vector<8x128xf32> to vector<8x128xbf16>
    %c0_19 = arith.constant 0 : index
    %c0_20 = arith.constant 0 : index
    %65 = vector.load %arg3[%c0_19, %c0_20] : memref<128x128xbf16, #tpu.memory_space<vmem>>, vector<128x128xbf16>
    %cst_21 = arith.constant dense<0.000000e+00> : vector<8x128xf32>
    %66 = tpu.matmul %64, %65, %cst_21 {dimension_numbers = #tpu.dot_dimension_numbers<[1], [0], [0], [1], [0, 0, 1, 1], [], []>} : vector<8x128xbf16>, vector<128x128xbf16>, vector<8x128xf32> -> vector<8x128xf32>
    %67 = vector.broadcast %36 : vector<1x128xf32> to vector<8x128xf32>
    %68 = arith.addf %66, %67 : vector<8x128xf32>
    %69 = arith.addf %44, %68 : vector<8x128xf32>
    %cst_22 = arith.constant dense<0.000000e+00> : vector<8xf32>
    %70 = vector.multi_reduction <add>, %69, %cst_22 [1] : vector<8x128xf32> to vector<8xf32>
    %71 = vector.shape_cast %70 : vector<8xf32> to vector<8x1xf32>
    %cst_23 = arith.constant 3.125000e-02 : f32
    %72 = vector.broadcast %cst_23 : f32 to vector<8x1xf32>
    %73 = arith.mulf %71, %72 : vector<8x1xf32>
    %74 = vector.broadcast %73 : vector<8x1xf32> to vector<8x128xf32>
    %75 = arith.subf %69, %74 : vector<8x128xf32>
    %76 = vector.broadcast %9 : vector<1x128xf32> to vector<8x128xf32>
    %77 = arith.mulf %75, %76 : vector<8x128xf32>
    %78 = arith.mulf %77, %77 : vector<8x128xf32>
    %cst_24 = arith.constant dense<0.000000e+00> : vector<8xf32>
    %79 = vector.multi_reduction <add>, %78, %cst_24 [1] : vector<8x128xf32> to vector<8xf32>
    %80 = vector.shape_cast %79 : vector<8xf32> to vector<8x1xf32>
    %cst_25 = arith.constant 3.125000e-02 : f32
    %81 = vector.broadcast %cst_25 : f32 to vector<8x1xf32>
    %82 = arith.mulf %80, %81 : vector<8x1xf32>
    %cst_26 = arith.constant 9.99999974E-6 : f32
    %83 = vector.broadcast %cst_26 : f32 to vector<8x1xf32>
    %84 = arith.addf %82, %83 : vector<8x1xf32>
    %85 = math.rsqrt %84 : vector<8x1xf32>
    %86 = vector.broadcast %85 : vector<8x1xf32> to vector<8x128xf32>
    %87 = arith.mulf %77, %86 : vector<8x128xf32>
    %cst_27 = arith.constant 5.000000e-01 : f32
    %88 = vector.broadcast %cst_27 : f32 to vector<8x128xf32>
    %89 = arith.mulf %88, %87 : vector<8x128xf32>
    %cst_28 = arith.constant 0.707106769 : f32
    %90 = vector.broadcast %cst_28 : f32 to vector<8x128xf32>
    %91 = arith.mulf %87, %90 : vector<8x128xf32>
    %cst_29 = arith.constant 0.000000e+00 : f32
    %92 = vector.broadcast %cst_29 : f32 to vector<8x128xf32>
    %93 = arith.cmpf oge, %91, %92 : vector<8x128xf32>
    %cst_30 = arith.constant 1.000000e+00 : f32
    %cst_31 = arith.constant -1.000000e+00 : f32
    %94 = vector.broadcast %cst_30 : f32 to vector<8x128xf32>
    %95 = vector.broadcast %cst_31 : f32 to vector<8x128xf32>
    %96 = arith.select %93, %94, %95 : vector<8x128xi1>, vector<8x128xf32>
    %97 = math.absf %91 : vector<8x128xf32>
    %cst_32 = arith.constant 0.327591091 : f32
    %98 = vector.broadcast %cst_32 : f32 to vector<8x128xf32>
    %99 = arith.mulf %98, %97 : vector<8x128xf32>
    %cst_33 = arith.constant 1.000000e+00 : f32
    %100 = vector.broadcast %cst_33 : f32 to vector<8x128xf32>
    %101 = arith.addf %100, %99 : vector<8x128xf32>
    %102 = tpu.reciprocal %101 {approx = true} : vector<8x128xf32> -> vector<8x128xf32>
    %103 = arith.mulf %101, %102 : vector<8x128xf32>
    %cst_34 = arith.constant 2.000000e+00 : f32
    %104 = vector.broadcast %cst_34 : f32 to vector<8x128xf32>
    %105 = arith.subf %104, %103 : vector<8x128xf32>
    %106 = arith.mulf %102, %105 : vector<8x128xf32>
    %cst_35 = arith.constant 1.06140542 : f32
    %107 = vector.broadcast %cst_35 : f32 to vector<8x128xf32>
    %108 = arith.mulf %107, %106 : vector<8x128xf32>
    %cst_36 = arith.constant -1.45315206 : f32
    %109 = vector.broadcast %cst_36 : f32 to vector<8x128xf32>
    %110 = arith.addf %108, %109 : vector<8x128xf32>
    %111 = arith.mulf %110, %106 : vector<8x128xf32>
    %cst_37 = arith.constant 1.42141378 : f32
    %112 = vector.broadcast %cst_37 : f32 to vector<8x128xf32>
    %113 = arith.addf %111, %112 : vector<8x128xf32>
    %114 = arith.mulf %113, %106 : vector<8x128xf32>
    %cst_38 = arith.constant -0.284496725 : f32
    %115 = vector.broadcast %cst_38 : f32 to vector<8x128xf32>
    %116 = arith.addf %114, %115 : vector<8x128xf32>
    %117 = arith.mulf %116, %106 : vector<8x128xf32>
    %cst_39 = arith.constant 0.254829586 : f32
    %118 = vector.broadcast %cst_39 : f32 to vector<8x128xf32>
    %119 = arith.addf %117, %118 : vector<8x128xf32>
    %120 = arith.mulf %119, %106 : vector<8x128xf32>
    %cst_40 = arith.constant 0.000000e+00 : f32
    %121 = vector.broadcast %cst_40 : f32 to vector<8x128xf32>
    %122 = arith.subf %121, %97 : vector<8x128xf32>
    %123 = arith.mulf %122, %97 : vector<8x128xf32>
    %124 = math.exp %123 : vector<8x128xf32>
    %125 = arith.mulf %120, %124 : vector<8x128xf32>
    %cst_41 = arith.constant 1.000000e+00 : f32
    %126 = vector.broadcast %cst_41 : f32 to vector<8x128xf32>
    %127 = arith.subf %126, %125 : vector<8x128xf32>
    %128 = arith.mulf %96, %127 : vector<8x128xf32>
    %cst_42 = arith.constant 1.000000e+00 : f32
    %129 = vector.broadcast %cst_42 : f32 to vector<8x128xf32>
    %130 = arith.addf %129, %128 : vector<8x128xf32>
    %131 = arith.mulf %89, %130 : vector<8x128xf32>
    %cst_43 = arith.constant dense<0.000000e+00> : vector<8xf32>
    %132 = vector.multi_reduction <add>, %131, %cst_43 [1] : vector<8x128xf32> to vector<8xf32>
    %133 = vector.shape_cast %132 : vector<8xf32> to vector<8x1xf32>
    %cst_44 = arith.constant 3.125000e-02 : f32
    %134 = vector.broadcast %cst_44 : f32 to vector<8x1xf32>
    %135 = arith.mulf %133, %134 : vector<8x1xf32>
    %136 = vector.broadcast %135 : vector<8x1xf32> to vector<8x128xf32>
    %137 = arith.subf %131, %136 : vector<8x128xf32>
    %138 = vector.broadcast %9 : vector<1x128xf32> to vector<8x128xf32>
    %139 = arith.mulf %137, %138 : vector<8x128xf32>
    %140 = arith.mulf %139, %139 : vector<8x128xf32>
    %cst_45 = arith.constant dense<0.000000e+00> : vector<8xf32>
    %141 = vector.multi_reduction <add>, %140, %cst_45 [1] : vector<8x128xf32> to vector<8xf32>
    %142 = vector.shape_cast %141 : vector<8xf32> to vector<8x1xf32>
    %cst_46 = arith.constant 3.125000e-02 : f32
    %143 = vector.broadcast %cst_46 : f32 to vector<8x1xf32>
    %144 = arith.mulf %142, %143 : vector<8x1xf32>
    %cst_47 = arith.constant 9.99999974E-6 : f32
    %145 = vector.broadcast %cst_47 : f32 to vector<8x1xf32>
    %146 = arith.addf %144, %145 : vector<8x1xf32>
    %147 = math.rsqrt %146 : vector<8x1xf32>
    %148 = vector.broadcast %147 : vector<8x1xf32> to vector<8x128xf32>
    %149 = arith.mulf %139, %148 : vector<8x128xf32>
    %150 = arith.truncf %149 : vector<8x128xf32> to vector<8x128xbf16>
    %c0_48 = arith.constant 0 : index
    %c0_49 = arith.constant 0 : index
    %151 = vector.load %arg7[%c0_48, %c0_49] : memref<8x256xf32, #tpu.memory_space<vmem>>, vector<1x256xf32>
    %c1_50 = arith.constant 1 : index
    %c0_51 = arith.constant 0 : index
    %152 = vector.load %arg7[%c1_50, %c0_51] : memref<8x256xf32, #tpu.memory_space<vmem>>, vector<1x128xf32>
    %c2_52 = arith.constant 2 : index
    %c128_53 = arith.constant 128 : index
    %153 = vector.load %arg7[%c2_52, %c128_53] : memref<8x256xf32, #tpu.memory_space<vmem>>, vector<1x128xf32>
    %c3_54 = arith.constant 3 : index
    %c128_55 = arith.constant 128 : index
    %154 = vector.load %arg7[%c3_54, %c128_55] : memref<8x256xf32, #tpu.memory_space<vmem>>, vector<1x128xf32>
    %c4_56 = arith.constant 4 : index
    %c128_57 = arith.constant 128 : index
    %155 = vector.load %arg7[%c4_56, %c128_57] : memref<8x256xf32, #tpu.memory_space<vmem>>, vector<1x128xf32>
    %c0_58 = arith.constant 0 : index
    %c0_59 = arith.constant 0 : index
    %156 = vector.load %arg5[%c0_58, %c0_59] : memref<128x256xbf16, #tpu.memory_space<vmem>>, vector<128x256xbf16>
    %cst_60 = arith.constant dense<0.000000e+00> : vector<8x256xf32>
    %157 = tpu.matmul %150, %156, %cst_60 {dimension_numbers = #tpu.dot_dimension_numbers<[1], [0], [0], [1], [0, 0, 1, 1], [], []>} : vector<8x128xbf16>, vector<128x256xbf16>, vector<8x256xf32> -> vector<8x256xf32>
    %158 = vector.broadcast %151 : vector<1x256xf32> to vector<8x256xf32>
    %159 = arith.addf %157, %158 : vector<8x256xf32>
    %160 = vector.extract_strided_slice %159 {offsets = [0, 0], sizes = [8, 128], strides = [1, 1]} : vector<8x256xf32> to vector<8x128xf32>
    %161 = vector.extract_strided_slice %159 {offsets = [0, 128], sizes = [8, 128], strides = [1, 1]} : vector<8x256xf32> to vector<8x128xf32>
    %162 = vector.broadcast %154 : vector<1x128xf32> to vector<8x128xf32>
    %163 = arith.subf %161, %162 : vector<8x128xf32>
    %164 = vector.broadcast %153 : vector<1x128xf32> to vector<8x128xf32>
    %165 = arith.mulf %163, %164 : vector<8x128xf32>
    %cst_61 = arith.constant 0.000000e+00 : f32
    %166 = vector.broadcast %cst_61 : f32 to vector<8x128xf32>
    %167 = arith.cmpf oge, %165, %166 : vector<8x128xf32>
    %cst_62 = arith.constant 1.000000e+00 : f32
    %168 = vector.broadcast %cst_62 : f32 to vector<8x128xf32>
    %169 = arith.cmpf olt, %165, %168 : vector<8x128xf32>
    %170 = arith.andi %167, %169 : vector<8x128xi1>
    %cst_63 = arith.constant 5.000000e-01 : f32
    %171 = vector.broadcast %cst_63 : f32 to vector<8x128xf32>
    %172 = arith.cmpf olt, %165, %171 : vector<8x128xf32>
    %cst_64 = arith.constant 0.841344773 : f32
    %cst_65 = arith.constant -0.158655256 : f32
    %173 = vector.broadcast %cst_64 : f32 to vector<8x128xf32>
    %174 = vector.broadcast %cst_65 : f32 to vector<8x128xf32>
    %175 = arith.select %172, %173, %174 : vector<8x128xi1>, vector<8x128xf32>
    %cst_66 = arith.constant 0.000000e+00 : f32
    %176 = vector.broadcast %cst_66 : f32 to vector<8x128xf32>
    %177 = arith.select %170, %175, %176 : vector<8x128xi1>, vector<8x128xf32>
    %178 = vector.broadcast %155 : vector<1x128xf32> to vector<8x128xf32>
    %179 = arith.mulf %178, %177 : vector<8x128xf32>
    %180 = arith.truncf %179 : vector<8x128xf32> to vector<8x128xbf16>
    %c0_67 = arith.constant 0 : index
    %c0_68 = arith.constant 0 : index
    %181 = vector.load %arg6[%c0_67, %c0_68] : memref<128x128xbf16, #tpu.memory_space<vmem>>, vector<128x128xbf16>
    %cst_69 = arith.constant dense<0.000000e+00> : vector<8x128xf32>
    %182 = tpu.matmul %180, %181, %cst_69 {dimension_numbers = #tpu.dot_dimension_numbers<[1], [0], [0], [1], [0, 0, 1, 1], [], []>} : vector<8x128xbf16>, vector<128x128xbf16>, vector<8x128xf32> -> vector<8x128xf32>
    %183 = vector.broadcast %152 : vector<1x128xf32> to vector<8x128xf32>
    %184 = arith.addf %182, %183 : vector<8x128xf32>
    %185 = arith.addf %160, %184 : vector<8x128xf32>
    %cst_70 = arith.constant dense<0.000000e+00> : vector<8xf32>
    %186 = vector.multi_reduction <add>, %185, %cst_70 [1] : vector<8x128xf32> to vector<8xf32>
    %187 = vector.shape_cast %186 : vector<8xf32> to vector<8x1xf32>
    %cst_71 = arith.constant 0.0416666679 : f32
    %188 = vector.broadcast %cst_71 : f32 to vector<8x1xf32>
    %189 = arith.mulf %187, %188 : vector<8x1xf32>
    %190 = vector.broadcast %189 : vector<8x1xf32> to vector<8x128xf32>
    %191 = arith.subf %185, %190 : vector<8x128xf32>
    %192 = vector.broadcast %14 : vector<1x128xf32> to vector<8x128xf32>
    %193 = arith.mulf %191, %192 : vector<8x128xf32>
    %194 = arith.mulf %193, %193 : vector<8x128xf32>
    %cst_72 = arith.constant dense<0.000000e+00> : vector<8xf32>
    %195 = vector.multi_reduction <add>, %194, %cst_72 [1] : vector<8x128xf32> to vector<8xf32>
    %196 = vector.shape_cast %195 : vector<8xf32> to vector<8x1xf32>
    %cst_73 = arith.constant 0.0416666679 : f32
    %197 = vector.broadcast %cst_73 : f32 to vector<8x1xf32>
    %198 = arith.mulf %196, %197 : vector<8x1xf32>
    %cst_74 = arith.constant 9.99999974E-6 : f32
    %199 = vector.broadcast %cst_74 : f32 to vector<8x1xf32>
    %200 = arith.addf %198, %199 : vector<8x1xf32>
    %201 = math.rsqrt %200 : vector<8x1xf32>
    %202 = vector.broadcast %201 : vector<8x1xf32> to vector<8x128xf32>
    %203 = arith.mulf %193, %202 : vector<8x128xf32>
    %204 = arith.truncf %15 : vector<8x128xf32> to vector<8x128xbf16>
    %c0_75 = arith.constant 0 : index
    %c0_76 = arith.constant 0 : index
    %205 = vector.load %arg8[%c0_75, %c0_76] : memref<128x128xbf16, #tpu.memory_space<vmem>>, vector<128x128xbf16>
    %cst_77 = arith.constant dense<0.000000e+00> : vector<8x128xf32>
    %206 = tpu.matmul %204, %205, %cst_77 {dimension_numbers = #tpu.dot_dimension_numbers<[1], [0], [0], [1], [0, 0, 1, 1], [], []>} : vector<8x128xbf16>, vector<128x128xbf16>, vector<8x128xf32> -> vector<8x128xf32>
    %c5 = arith.constant 5 : index
    %c0_78 = arith.constant 0 : index
    %207 = vector.load %arg7[%c5, %c0_78] : memref<8x256xf32, #tpu.memory_space<vmem>>, vector<1x128xf32>
    %208 = vector.broadcast %207 : vector<1x128xf32> to vector<8x128xf32>
    %209 = arith.addf %206, %208 : vector<8x128xf32>
    %210 = arith.addf %203, %209 : vector<8x128xf32>
    %c0_79 = arith.constant 0 : index
    %c0_80 = arith.constant 0 : index
    %211 = vector.load %arg9[%c0_79, %c0_80] : memref<8x128xf32, #tpu.memory_space<vmem>>, vector<8x128xf32>
    tpu.vector_store %arg9[%c0_79, %c0_80], %210 {strides = array<i32>} : memref<8x128xf32, #tpu.memory_space<vmem>>, vector<8x128xf32>,
    return
  }
  func.func @transform_0(%arg0: i32) -> (i32, i32) {
    %c0_i32 = arith.constant 0 : i32
    %c0_i32_0 = arith.constant 0 : i32
    return %arg0, %c0_i32 : i32, i32
  }
  func.func @transform_1(%arg0: i32) -> (i32, i32) {
    %c0_i32 = arith.constant 0 : i32
    %c0_i32_0 = arith.constant 0 : i32
    %c0_i32_1 = arith.constant 0 : i32
    return %c0_i32, %c0_i32_0 : i32, i32
  }
  func.func @transform_2(%arg0: i32) -> (i32, i32) {
    %c0_i32 = arith.constant 0 : i32
    %c0_i32_0 = arith.constant 0 : i32
    %c0_i32_1 = arith.constant 0 : i32
    return %c0_i32, %c0_i32_0 : i32, i32
  }
  func.func @transform_3(%arg0: i32) -> (i32, i32) {
    %c0_i32 = arith.constant 0 : i32
    %c0_i32_0 = arith.constant 0 : i32
    %c0_i32_1 = arith.constant 0 : i32
    return %c0_i32, %c0_i32_0 : i32, i32
  }
  func.func @transform_4(%arg0: i32) -> (i32, i32) {
    %c0_i32 = arith.constant 0 : i32
    %c0_i32_0 = arith.constant 0 : i32
    %c0_i32_1 = arith.constant 0 : i32
    return %c0_i32, %c0_i32_0 : i32, i32
  }
  func.func @transform_5(%arg0: i32) -> (i32, i32) {
    %c0_i32 = arith.constant 0 : i32
    %c0_i32_0 = arith.constant 0 : i32
    %c0_i32_1 = arith.constant 0 : i32
    return %c0_i32, %c0_i32_0 : i32, i32
  }
  func.func @transform_6(%arg0: i32) -> (i32, i32) {
    %c0_i32 = arith.constant 0 : i32
    %c0_i32_0 = arith.constant 0 : i32
    %c0_i32_1 = arith.constant 0 : i32
    return %c0_i32, %c0_i32_0 : i32, i32
  }
  func.func @transform_7(%arg0: i32) -> (i32, i32) {
    %c0_i32 = arith.constant 0 : i32
    %c0_i32_0 = arith.constant 0 : i32
    %c0_i32_1 = arith.constant 0 : i32
    return %c0_i32, %c0_i32_0 : i32, i32
  }
  func.func @transform_8(%arg0: i32) -> (i32, i32) {
    %c0_i32 = arith.constant 0 : i32
    %c0_i32_0 = arith.constant 0 : i32
    return %arg0, %c0_i32 : i32, i32
  }
}

module attributes {stable_mosaic.version = 11 : i64} {
  func.func @wkan_kernel(%arg0: i32, %arg1: memref<8x128xf32, #tpu.memory_space<vmem>>, %arg2: memref<128x256xbf16, #tpu.memory_space<vmem>>, %arg3: memref<128x128xbf16, #tpu.memory_space<vmem>>, %arg4: memref<8x256xf32, #tpu.memory_space<vmem>>, %arg5: memref<128x256xbf16, #tpu.memory_space<vmem>>, %arg6: memref<128x128xbf16, #tpu.memory_space<vmem>>, %arg7: memref<8x256xf32, #tpu.memory_space<vmem>>, %arg8: memref<128x128xbf16, #tpu.memory_space<vmem>>, %arg9: memref<8x128xf32, #tpu.memory_space<vmem>>) attributes {dimension_semantics = [#tpu.dimension_semantics<parallel>], iteration_bounds = array<i64: 1>, scalar_prefetch = 0 : i64, scratch_operands = 0 : i64, tpu.core_type = #tpu.core_type<tc>, window_params = [{transform_indices = @transform_0, window_bounds = array<i64: 8, 128>}, {pipeline_mode = #tpu.pipeline_mode<synchronous>, transform_indices = @transform_1, window_bounds = array<i64: 128, 256>}, {pipeline_mode = #tpu.pipeline_mode<synchronous>, transform_indices = @transform_2, window_bounds = array<i64: 128, 128>}, {pipeline_mode = #tpu.pipeline_mode<synchronous>, transform_indices = @transform_3, window_bounds = array<i64: 8, 256>}, {pipeline_mode = #tpu.pipeline_mode<synchronous>, transform_indices = @transform_4, window_bounds = array<i64: 128, 256>}, {pipeline_mode = #tpu.pipeline_mode<synchronous>, transform_indices = @transform_5, window_bounds = array<i64: 128, 128>}, {pipeline_mode = #tpu.pipeline_mode<synchronous>, transform_indices = @transform_6, window_bounds = array<i64: 8, 256>}, {pipeline_mode = #tpu.pipeline_mode<synchronous>, transform_indices = @transform_7, window_bounds = array<i64: 128, 128>}, {transform_indices = @transform_8, window_bounds = array<i64: 8, 128>}]} {
    %0 = tpu.iota {dimensions = array<i32: 1>} : vector<1x128xi32>
    %c16_i32 = arith.constant 16 : i32
    %1 = vector.broadcast %c16_i32 : i32 to vector<1x128xi32>
    %2 = arith.cmpi slt, %0, %1 : vector<1x128xi32>
    %3 = arith.extui %2 : vector<1x128xi1> to vector<1x128xi32>
    %4 = arith.sitofp %3 : vector<1x128xi32> to vector<1x128xf32>
    %5 = tpu.iota {dimensions = array<i32: 1>} : vector<1x128xi32>
    %c32_i32 = arith.constant 32 : i32
    %6 = vector.broadcast %c32_i32 : i32 to vector<1x128xi32>
    %7 = arith.cmpi slt, %5, %6 : vector<1x128xi32>
    %8 = arith.extui %7 : vector<1x128xi1> to vector<1x128xi32>
    %9 = arith.sitofp %8 : vector<1x128xi32> to vector<1x128xf32>
    %10 = tpu.iota {dimensions = array<i32: 1>} : vector<1x128xi32>
    %c24_i32 = arith.constant 24 : i32
    %11 = vector.broadcast %c24_i32 : i32 to vector<1x128xi32>
    %12 = arith.cmpi slt, %10, %11 : vector<1x128xi32>
    %13 = arith.extui %12 : vector<1x128xi1> to vector<1x128xi32>
    %14 = arith.sitofp %13 : vector<1x128xi32> to vector<1x128xf32>
    %c0 = arith.constant 0 : index
    %c0_0 = arith.constant 0 : index
    %15 = vector.load %arg1[%c0, %c0_0] : memref<8x128xf32, #tpu.memory_space<vmem>>, vector<8x128xf32>
    %cst = arith.constant dense<0.000000e+00> : vector<8xf32>
    %16 = vector.multi_reduction <add>, %15, %cst [1] : vector<8x128xf32> to vector<8xf32>
    %17 = vector.shape_cast %16 : vector<8xf32> to vector<8x1xf32>
    %cst_1 = arith.constant 6.250000e-02 : f32
    %18 = vector.broadcast %cst_1 : f32 to vector<8x1xf32>
    %19 = arith.mulf %17, %18 : vector<8x1xf32>
    %20 = vector.broadcast %19 : vector<8x1xf32> to vector<8x128xf32>
    %21 = arith.subf %15, %20 : vector<8x128xf32>
    %22 = vector.broadcast %4 : vector<1x128xf32> to vector<8x128xf32>
    %23 = arith.mulf %21, %22 : vector<8x128xf32>
    %24 = arith.mulf %23, %23 : vector<8x128xf32>
    %cst_2 = arith.constant dense<0.000000e+00> : vector<8xf32>
    %25 = vector.multi_reduction <add>, %24, %cst_2 [1] : vector<8x128xf32> to vector<8xf32>
    %26 = vector.shape_cast %25 : vector<8xf32> to vector<8x1xf32>
    %cst_3 = arith.constant 6.250000e-02 : f32
    %27 = vector.broadcast %cst_3 : f32 to vector<8x1xf32>
    %28 = arith.mulf %26, %27 : vector<8x1xf32>
    %cst_4 = arith.constant 9.99999974E-6 : f32
    %29 = vector.broadcast %cst_4 : f32 to vector<8x1xf32>
    %30 = arith.addf %28, %29 : vector<8x1xf32>
    %31 = math.rsqrt %30 : vector<8x1xf32>
    %32 = vector.broadcast %31 : vector<8x1xf32> to vector<8x128xf32>
    %33 = arith.mulf %23, %32 : vector<8x128xf32>
    %34 = arith.truncf %33 : vector<8x128xf32> to vector<8x128xbf16>
    %c0_5 = arith.constant 0 : index
    %c0_6 = arith.constant 0 : index
    %35 = vector.load %arg4[%c0_5, %c0_6] : memref<8x256xf32, #tpu.memory_space<vmem>>, vector<1x256xf32>
    %c1 = arith.constant 1 : index
    %c0_7 = arith.constant 0 : index
    %36 = vector.load %arg4[%c1, %c0_7] : memref<8x256xf32, #tpu.memory_space<vmem>>, vector<1x128xf32>
    %c2 = arith.constant 2 : index
    %c128 = arith.constant 128 : index
    %37 = vector.load %arg4[%c2, %c128] : memref<8x256xf32, #tpu.memory_space<vmem>>, vector<1x128xf32>
    %c3 = arith.constant 3 : index
    %c128_8 = arith.constant 128 : index
    %38 = vector.load %arg4[%c3, %c128_8] : memref<8x256xf32, #tpu.memory_space<vmem>>, vector<1x128xf32>
    %c4 = arith.constant 4 : index
    %c128_9 = arith.constant 128 : index
    %39 = vector.load %arg4[%c4, %c128_9] : memref<8x256xf32, #tpu.memory_space<vmem>>, vector<1x128xf32>
    %c0_10 = arith.constant 0 : index
    %c0_11 = arith.constant 0 : index
    %40 = vector.load %arg2[%c0_10, %c0_11] : memref<128x256xbf16, #tpu.memory_space<vmem>>, vector<128x256xbf16>
    %cst_12 = arith.constant dense<0.000000e+00> : vector<8x256xf32>
    %41 = tpu.matmul %34, %40, %cst_12 {dimension_numbers = #tpu.dot_dimension_numbers<[1], [0], [0], [1], [0, 0, 1, 1], [], []>} : vector<8x128xbf16>, vector<128x256xbf16>, vector<8x256xf32> -> vector<8x256xf32>
    %42 = vector.broadcast %35 : vector<1x256xf32> to vector<8x256xf32>
    %43 = arith.addf %41, %42 : vector<8x256xf32>
    %44 = vector.extract_strided_slice %43 {offsets = [0, 0], sizes = [8, 128], strides = [1, 1]} : vector<8x256xf32> to vector<8x128xf32>
    %45 = vector.extract_strided_slice %43 {offsets = [0, 128], sizes = [8, 128], strides = [1, 1]} : vector<8x256xf32> to vector<8x128xf32>
    %46 = vector.broadcast %38 : vector<1x128xf32> to vector<8x128xf32>
    %47 = arith.subf %45, %46 : vector<8x128xf32>
    %48 = vector.broadcast %37 : vector<1x128xf32> to vector<8x128xf32>
    %49 = arith.mulf %47, %48 : vector<8x128xf32>
    %cst_13 = arith.constant 0.000000e+00 : f32
    %50 = vector.broadcast %cst_13 : f32 to vector<8x128xf32>
    %51 = arith.cmpf oge, %49, %50 : vector<8x128xf32>
    %cst_14 = arith.constant 1.000000e+00 : f32
    %52 = vector.broadcast %cst_14 : f32 to vector<8x128xf32>
    %53 = arith.cmpf olt, %49, %52 : vector<8x128xf32>
    %54 = arith.andi %51, %53 : vector<8x128xi1>
    %cst_15 = arith.constant 5.000000e-01 : f32
    %55 = vector.broadcast %cst_15 : f32 to vector<8x128xf32>
    %56 = arith.cmpf olt, %49, %55 : vector<8x128xf32>
    %cst_16 = arith.constant 0.841344773 : f32
    %cst_17 = arith.constant -0.158655256 : f32
    %57 = vector.broadcast %cst_16 : f32 to vector<8x128xf32>
    %58 = vector.broadcast %cst_17 : f32 to vector<8x128xf32>
    %59 = arith.select %56, %57, %58 : vector<8x128xi1>, vector<8x128xf32>
    %cst_18 = arith.constant 0.000000e+00 : f32
    %60 = vector.broadcast %cst_18 : f32 to vector<8x128xf32>
    %61 = arith.select %54, %59, %60 : vector<8x128xi1>, vector<8x128xf32>
    %62 = vector.broadcast %39 : vector<1x128xf32> to vector<8x128xf32>
    %63 = arith.mulf %62, %61 : vector<8x128xf32>
    %64 = arith.truncf %63 : vector<8x128xf32> to vector<8x128xbf16>
    %c0_19 = arith.constant 0 : index
    %c0_20 = arith.constant 0 : index
    %65 = vector.load %arg3[%c0_19, %c0_20] : memref<128x128xbf16, #tpu.memory_space<vmem>>, vector<128x128xbf16>
    %cst_21 = arith.constant dense<0.000000e+00> : vector<8x128xf32>
    %66 = tpu.matmul %64, %65, %cst_21 {dimension_numbers = #tpu.dot_dimension_numbers<[1], [0], [0], [1], [0, 0, 1, 1], [], []>} : vector<8x128xbf16>, vector<128x128xbf16>, vector<8x128xf32> -> vector<8x128xf32>
    %67 = vector.broadcast %36 : vector<1x128xf32> to vector<8x128xf32>
    %68 = arith.addf %66, %67 : vector<8x128xf32>
    %69 = arith.addf %44, %68 : vector<8x128xf32>
    %cst_22 = arith.constant dense<0.000000e+00> : vector<8xf32>
    %70 = vector.multi_reduction <add>, %69, %cst_22 [1] : vector<8x128xf32> to vector<8xf32>
    %71 = vector.shape_cast %70 : vector<8xf32> to vector<8x1xf32>
    %cst_23 = arith.constant 3.125000e-02 : f32
    %72 = vector.broadcast %cst_23 : f32 to vector<8x1xf32>
    %73 = arith.mulf %71, %72 : vector<8x1xf32>
    %74 = vector.broadcast %73 : vector<8x1xf32> to vector<8x128xf32>
    %75 = arith.subf %69, %74 : vector<8x128xf32>
    %76 = vector.broadcast %9 : vector<1x128xf32> to vector<8x128xf32>
    %77 = arith.mulf %75, %76 : vector<8x128xf32>
    %78 = arith.mulf %77, %77 : vector<8x128xf32>
    %cst_24 = arith.constant dense<0.000000e+00> : vector<8xf32>
    %79 = vector.multi_reduction <add>, %78, %cst_24 [1] : vector<8x128xf32> to vector<8xf32>
    %80 = vector.shape_cast %79 : vector<8xf32> to vector<8x1xf32>
    %cst_25 = arith.constant 3.125000e-02 : f32
    %81 = vector.broadcast %cst_25 : f32 to vector<8x1xf32>
    %82 = arith.mulf %80, %81 : vector<8x1xf32>
    %cst_26 = arith.constant 9.99999974E-6 : f32
    %83 = vector.broadcast %cst_26 : f32 to vector<8x1xf32>
    %84 = arith.addf %82, %83 : vector<8x1xf32>
    %85 = math.rsqrt %84 : vector<8x1xf32>
    %86 = vector.broadcast %85 : vector<8x1xf32> to vector<8x128xf32>
    %87 = arith.mulf %77, %86 : vector<8x128xf32>
    %cst_27 = arith.constant 5.000000e-01 : f32
    %88 = vector.broadcast %cst_27 : f32 to vector<8x128xf32>
    %89 = arith.mulf %88, %87 : vector<8x128xf32>
    %cst_28 = arith.constant 0.707106769 : f32
    %90 = vector.broadcast %cst_28 : f32 to vector<8x128xf32>
    %91 = arith.mulf %87, %90 : vector<8x128xf32>
    %cst_29 = arith.constant 0.000000e+00 : f32
    %92 = vector.broadcast %cst_29 : f32 to vector<8x128xf32>
    %93 = arith.cmpf oge, %91, %92 : vector<8x128xf32>
    %cst_30 = arith.constant 1.000000e+00 : f32
    %cst_31 = arith.constant -1.000000e+00 : f32
    %94 = vector.broadcast %cst_30 : f32 to vector<8x128xf32>
    %95 = vector.broadcast %cst_31 : f32 to vector<8x128xf32>
    %96 = arith.select %93, %94, %95 : vector<8x128xi1>, vector<8x128xf32>
    %97 = math.absf %91 : vector<8x128xf32>
    %cst_32 = arith.constant 0.327591091 : f32
    %98 = vector.broadcast %cst_32 : f32 to vector<8x128xf32>
    %99 = arith.mulf %98, %97 : vector<8x128xf32>
    %cst_33 = arith.constant 1.000000e+00 : f32
    %100 = vector.broadcast %cst_33 : f32 to vector<8x128xf32>
    %101 = arith.addf %100, %99 : vector<8x128xf32>
    %102 = tpu.reciprocal %101 {approx = true} : vector<8x128xf32> -> vector<8x128xf32>
    %103 = arith.mulf %101, %102 : vector<8x128xf32>
    %cst_34 = arith.constant 2.000000e+00 : f32
    %104 = vector.broadcast %cst_34 : f32 to vector<8x128xf32>
    %105 = arith.subf %104, %103 : vector<8x128xf32>
    %106 = arith.mulf %102, %105 : vector<8x128xf32>
    %cst_35 = arith.constant 1.06140542 : f32
    %107 = vector.broadcast %cst_35 : f32 to vector<8x128xf32>
    %108 = arith.mulf %107, %106 : vector<8x128xf32>
    %cst_36 = arith.constant -1.45315206 : f32
    %109 = vector.broadcast %cst_36 : f32 to vector<8x128xf32>
    %110 = arith.addf %108, %109 : vector<8x128xf32>
    %111 = arith.mulf %110, %106 : vector<8x128xf32>
    %cst_37 = arith.constant 1.42141378 : f32
    %112 = vector.broadcast %cst_37 : f32 to vector<8x128xf32>
    %113 = arith.addf %111, %112 : vector<8x128xf32>
    %114 = arith.mulf %113, %106 : vector<8x128xf32>
    %cst_38 = arith.constant -0.284496725 : f32
    %115 = vector.broadcast %cst_38 : f32 to vector<8x128xf32>
    %116 = arith.addf %114, %115 : vector<8x128xf32>
    %117 = arith.mulf %116, %106 : vector<8x128xf32>
    %cst_39 = arith.constant 0.254829586 : f32
    %118 = vector.broadcast %cst_39 : f32 to vector<8x128xf32>
    %119 = arith.addf %117, %118 : vector<8x128xf32>
    %120 = arith.mulf %119, %106 : vector<8x128xf32>
    %cst_40 = arith.constant 0.000000e+00 : f32
    %121 = vector.broadcast %cst_40 : f32 to vector<8x128xf32>
    %122 = arith.subf %121, %97 : vector<8x128xf32>
    %123 = arith.mulf %122, %97 : vector<8x128xf32>
    %124 = math.exp %123 : vector<8x128xf32>
    %125 = arith.mulf %120, %124 : vector<8x128xf32>
    %cst_41 = arith.constant 1.000000e+00 : f32
    %126 = vector.broadcast %cst_41 : f32 to vector<8x128xf32>
    %127 = arith.subf %126, %125 : vector<8x128xf32>
    %128 = arith.mulf %96, %127 : vector<8x128xf32>
    %cst_42 = arith.constant 1.000000e+00 : f32
    %129 = vector.broadcast %cst_42 : f32 to vector<8x128xf32>
    %130 = arith.addf %129, %128 : vector<8x128xf32>
    %131 = arith.mulf %89, %130 : vector<8x128xf32>
    %cst_43 = arith.constant dense<0.000000e+00> : vector<8xf32>
    %132 = vector.multi_reduction <add>, %131, %cst_43 [1] : vector<8x128xf32> to vector<8xf32>
    %133 = vector.shape_cast %132 : vector<8xf32> to vector<8x1xf32>
    %cst_44 = arith.constant 3.125000e-02 : f32
    %134 = vector.broadcast %cst_44 : f32 to vector<8x1xf32>
    %135 = arith.mulf %133, %134 : vector<8x1xf32>
    %136 = vector.broadcast %135 : vector<8x1xf32> to vector<8x128xf32>
    %137 = arith.subf %131, %136 : vector<8x128xf32>
    %138 = vector.broadcast %9 : vector<1x128xf32> to vector<8x128xf32>
    %139 = arith.mulf %137, %138 : vector<8x128xf32>
    %140 = arith.mulf %139, %139 : vector<8x128xf32>
    %cst_45 = arith.constant dense<0.000000e+00> : vector<8xf32>
    %141 = vector.multi_reduction <add>, %140, %cst_45 [1] : vector<8x128xf32> to vector<8xf32>
    %142 = vector.shape_cast %141 : vector<8xf32> to vector<8x1xf32>
    %cst_46 = arith.constant 3.125000e-02 : f32
    %143 = vector.broadcast %cst_46 : f32 to vector<8x1xf32>
    %144 = arith.mulf %142, %143 : vector<8x1xf32>
    %cst_47 = arith.constant 9.99999974E-6 : f32
    %145 = vector.broadcast %cst_47 : f32 to vector<8x1xf32>
    %146 = arith.addf %144, %145 : vector<8x1xf32>
    %147 = math.rsqrt %146 : vector<8x1xf32>
    %148 = vector.broadcast %147 : vector<8x1xf32> to vector<8x128xf32>
    %149 = arith.mulf %139, %148 : vector<8x128xf32>
    %150 = arith.truncf %149 : vector<8x128xf32> to vector<8x128xbf16>
    %c0_48 = arith.constant 0 : index
    %c0_49 = arith.constant 0 : index
    %151 = vector.load %arg7[%c0_48, %c0_49] : memref<8x256xf32, #tpu.memory_space<vmem>>, vector<1x256xf32>
    %c1_50 = arith.constant 1 : index
    %c0_51 = arith.constant 0 : index
    %152 = vector.load %arg7[%c1_50, %c0_51] : memref<8x256xf32, #tpu.memory_space<vmem>>, vector<1x128xf32>
    %c2_52 = arith.constant 2 : index
    %c128_53 = arith.constant 128 : index
    %153 = vector.load %arg7[%c2_52, %c128_53] : memref<8x256xf32, #tpu.memory_space<vmem>>, vector<1x128xf32>
    %c3_54 = arith.constant 3 : index
    %c128_55 = arith.constant 128 : index
    %154 = vector.load %arg7[%c3_54, %c128_55] : memref<8x256xf32, #tpu.memory_space<vmem>>, vector<1x128xf32>
    %c4_56 = arith.constant 4 : index
    %c128_57 = arith.constant 128 : index
    %155 = vector.load %arg7[%c4_56, %c128_57] : memref<8x256xf32, #tpu.memory_space<vmem>>, vector<1x128xf32>
    %c0_58 = arith.constant 0 : index
    %c0_59 = arith.constant 0 : index
    %156 = vector.load %arg5[%c0_58, %c0_59] : memref<128x256xbf16, #tpu.memory_space<vmem>>, vector<128x256xbf16>
    %cst_60 = arith.constant dense<0.000000e+00> : vector<8x256xf32>
    %157 = tpu.matmul %150, %156, %cst_60 {dimension_numbers = #tpu.dot_dimension_numbers<[1], [0], [0], [1], [0, 0, 1, 1], [], []>} : vector<8x128xbf16>, vector<128x256xbf16>, vector<8x256xf32> -> vector<8x256xf32>
    %158 = vector.broadcast %151 : vector<1x256xf32> to vector<8x256xf32>
    %159 = arith.addf %157, %158 : vector<8x256xf32>
    %160 = vector.extract_strided_slice %159 {offsets = [0, 0], sizes = [8, 128], strides = [1, 1]} : vector<8x256xf32> to vector<8x128xf32>
    %161 = vector.extract_strided_slice %159 {offsets = [0, 128], sizes = [8, 128], strides = [1, 1]} : vector<8x256xf32> to vector<8x128xf32>
    %162 = vector.broadcast %154 : vector<1x128xf32> to vector<8x128xf32>
    %163 = arith.subf %161, %162 : vector<8x128xf32>
    %164 = vector.broadcast %153 : vector<1x128xf32> to vector<8x128xf32>
    %165 = arith.mulf %163, %164 : vector<8x128xf32>
    %cst_61 = arith.constant 0.000000e+00 : f32
    %166 = vector.broadcast %cst_61 : f32 to vector<8x128xf32>
    %167 = arith.cmpf oge, %165, %166 : vector<8x128xf32>
    %cst_62 = arith.constant 1.000000e+00 : f32
    %168 = vector.broadcast %cst_62 : f32 to vector<8x128xf32>
    %169 = arith.cmpf olt, %165, %168 : vector<8x128xf32>
    %170 = arith.andi %167, %169 : vector<8x128xi1>
    %cst_63 = arith.constant 5.000000e-01 : f32
    %171 = vector.broadcast %cst_63 : f32 to vector<8x128xf32>
    %172 = arith.cmpf olt, %165, %171 : vector<8x128xf32>
    %cst_64 = arith.constant 0.841344773 : f32
    %cst_65 = arith.constant -0.158655256 : f32
    %173 = vector.broadcast %cst_64 : f32 to vector<8x128xf32>
    %174 = vector.broadcast %cst_65 : f32 to vector<8x128xf32>
    %175 = arith.select %172, %173, %174 : vector<8x128xi1>, vector<8x128xf32>
    %cst_66 = arith.constant 0.000000e+00 : f32
    %176 = vector.broadcast %cst_66 : f32 to vector<8x128xf32>
    %177 = arith.select %170, %175, %176 : vector<8x128xi1>, vector<8x128xf32>
    %178 = vector.broadcast %155 : vector<1x128xf32> to vector<8x128xf32>
    %179 = arith.mulf %178, %177 : vector<8x128xf32>
    %180 = arith.truncf %179 : vector<8x128xf32> to vector<8x128xbf16>
    %c0_67 = arith.constant 0 : index
    %c0_68 = arith.constant 0 : index
    %181 = vector.load %arg6[%c0_67, %c0_68] : memref<128x128xbf16, #tpu.memory_space<vmem>>, vector<128x128xbf16>
    %cst_69 = arith.constant dense<0.000000e+00> : vector<8x128xf32>
    %182 = tpu.matmul %180, %181, %cst_69 {dimension_numbers = #tpu.dot_dimension_numbers<[1], [0], [0], [1], [0, 0, 1, 1], [], []>} : vector<8x128xbf16>, vector<128x128xbf16>, vector<8x128xf32> -> vector<8x128xf32>
    %183 = vector.broadcast %152 : vector<1x128xf32> to vector<8x128xf32>
    %184 = arith.addf %182, %183 : vector<8x128xf32>
    %185 = arith.addf %160, %184 : vector<8x128xf32>
    %cst_70 = arith.constant dense<0.000000e+00> : vector<8xf32>
    %186 = vector.multi_reduction <add>, %185, %cst_70 [1] : vector<8x128xf32> to vector<8xf32>
    %187 = vector.shape_cast %186 : vector<8xf32> to vector<8x1xf32>
    %cst_71 = arith.constant 0.0416666679 : f32
    %188 = vector.broadcast %cst_71 : f32 to vector<8x1xf32>
    %189 = arith.mulf %187, %188 : vector<8x1xf32>
    %190 = vector.broadcast %189 : vector<8x1xf32> to vector<8x128xf32>
    %191 = arith.subf %185, %190 : vector<8x128xf32>
    %192 = vector.broadcast %14 : vector<1x128xf32> to vector<8x128xf32>
    %193 = arith.mulf %191, %192 : vector<8x128xf32>
    %194 = arith.mulf %193, %193 : vector<8x128xf32>
    %cst_72 = arith.constant dense<0.000000e+00> : vector<8xf32>
    %195 = vector.multi_reduction <add>, %194, %cst_72 [1] : vector<8x128xf32> to vector<8xf32>
    %196 = vector.shape_cast %195 : vector<8xf32> to vector<8x1xf32>
    %cst_73 = arith.constant 0.0416666679 : f32
    %197 = vector.broadcast %cst_73 : f32 to vector<8x1xf32>
    %198 = arith.mulf %196, %197 : vector<8x1xf32>
    %cst_74 = arith.constant 9.99999974E-6 : f32
    %199 = vector.broadcast %cst_74 : f32 to vector<8x1xf32>
    %200 = arith.addf %198, %199 : vector<8x1xf32>
    %201 = math.rsqrt %200 : vector<8x1xf32>
    %202 = vector.broadcast %201 : vector<8x1xf32> to vector<8x128xf32>
    %203 = arith.mulf %193, %202 : vector<8x128xf32>
    %204 = arith.truncf %15 : vector<8x128xf32> to vector<8x128xbf16>
    %c0_75 = arith.constant 0 : index
    %c0_76 = arith.constant 0 : index
    %205 = vector.load %arg8[%c0_75, %c0_76] : memref<128x128xbf16, #tpu.memory_space<vmem>>, vector<128x128xbf16>
    %cst_77 = arith.constant dense<0.000000e+00> : vector<8x128xf32>
    %206 = tpu.matmul %204, %205, %cst_77 {dimension_numbers = #tpu.dot_dimension_numbers<[1], [0], [0], [1], [0, 0, 1, 1], [], []>} : vector<8x128xbf16>, vector<128x128xbf16>, vector<8x128xf32> -> vector<8x128xf32>
    %c5 = arith.constant 5 : index
    %c0_78 = arith.constant 0 : index
    %207 = vector.load %arg7[%c5, %c0_78] : memref<8x256xf32, #tpu.memory_space<vmem>>, vector<1x128xf32>
    %208 = vector.broadcast %207 : vector<1x128xf32> to vector<8x128xf32>
    %209 = arith.addf %206, %208 : vector<8x128xf32>
    %210 = arith.addf %203, %209 : vector<8x128xf32>
    %c0_79 = arith.constant 0 : index
    %c0_80 = arith.constant 0 : index
    %211 = vector.load %arg9[%c0_79, %c0_80] : memref<8x128xf32, #tpu.memory_space<vmem>>, vector<8x128xf32>
    tpu.vector_store %arg9[%c0_79, %c0_80], %210 {strides = array<i32>} : memref<8x128xf32, #tpu.memory_space<vmem>>, vector<8x128xf32>,
    return
  }
  func.func @transform_0(%arg0: i32) -> (i32, i32) {
    %c0_i32 = arith.constant 0 : i32
    %c0_i32_0 = arith.constant 0 : i32
    return %arg0, %c0_i32 : i32, i32
  }
  func.func @transform_1(%arg0: i32) -> (i32, i32) {
    %c0_i32 = arith.constant 0 : i32
    %c0_i32_0 = arith.constant 0 : i32
    %c0_i32_1 = arith.constant 0 : i32
    return %c0_i32, %c0_i32_0 : i32, i32
  }
  func.func @transform_2(%arg0: i32) -> (i32, i32) {
    %c0_i32 = arith.constant 0 : i32
    %c0_i32_0 = arith.constant 0 : i32
    %c0_i32_1 = arith.constant 0 : i32
    return %c0_i32, %c0_i32_0 : i32, i32
  }
  func.func @transform_3(%arg0: i32) -> (i32, i32) {
    %c0_i32 = arith.constant 0 : i32
    %c0_i32_0 = arith.constant 0 : i32
    %c0_i32_1 = arith.constant 0 : i32
    return %c0_i32, %c0_i32_0 : i32, i32
  }
  func.func @transform_4(%arg0: i32) -> (i32, i32) {
    %c0_i32 = arith.constant 0 : i32
    %c0_i32_0 = arith.constant 0 : i32
    %c0_i32_1 = arith.constant 0 : i32
    return %c0_i32, %c0_i32_0 : i32, i32
  }
  func.func @transform_5(%arg0: i32) -> (i32, i32) {
    %c0_i32 = arith.constant 0 : i32
    %c0_i32_0 = arith.constant 0 : i32
    %c0_i32_1 = arith.constant 0 : i32
    return %c0_i32, %c0_i32_0 : i32, i32
  }
  func.func @transform_6(%arg0: i32) -> (i32, i32) {
    %c0_i32 = arith.constant 0 : i32
    %c0_i32_0 = arith.constant 0 : i32
    %c0_i32_1 = arith.constant 0 : i32
    return %c0_i32, %c0_i32_0 : i32, i32
  }
  func.func @transform_7(%arg0: i32) -> (i32, i32) {
    %c0_i32 = arith.constant 0 : i32
    %c0_i32_0 = arith.constant 0 : i32
    %c0_i32_1 = arith.constant 0 : i32
    return %c0_i32, %c0_i32_0 : i32, i32
  }
  func.func @transform_8(%arg0: i32) -> (i32, i32) {
    %c0_i32 = arith.constant 0 : i32
    %c0_i32_0 = arith.constant 0 : i32
    return %arg0, %c0_i32 : i32, i32
  }
}

</mosaic_0001>

<llo_original>
// kernel: tpu_custom_call.1
$region0: #{tpu_custom_call.1}
  #allocation0 [shape = 'u32[]', space=smem, size = 0x4, offset = 0x4, fixed_abs, tag = 'smem constant byte address 0x4 - core index']
  #allocation1 [shape = 'u32[72,128]{1,0:T(1,128)}', space=vmem, size = 0x9000, scoped, tag = 'internal scratch']
  %s0 = inlined_call_operand.hbm [shape: f32[8,128], index: 0, kind: input, shape index: {}]
  %s1 = inlined_call_operand.hbm [shape: bf16[128,256], index: 1, kind: input, shape index: {}]
  %s2 = inlined_call_operand.hbm [shape: bf16[128,128], index: 2, kind: input, shape index: {}]
  %s3 = inlined_call_operand.hbm [shape: f32[8,256], index: 3, kind: input, shape index: {}]
  %s4 = inlined_call_operand.hbm [shape: bf16[128,256], index: 4, kind: input, shape index: {}]
  %s5 = inlined_call_operand.hbm [shape: bf16[128,128], index: 5, kind: input, shape index: {}]
  %s6 = inlined_call_operand.hbm [shape: f32[8,256], index: 6, kind: input, shape index: {}]
  %s7 = inlined_call_operand.hbm [shape: bf16[128,128], index: 7, kind: input, shape index: {}]
  %s8 = inlined_call_operand.hbm [shape: f32[8,128], index: 8, kind: output, shape index: {}]
  %s9 = sld [smem:[#allocation0]]
  $region74: #{tpu_custom_call.1} parent=0
    _
  %s11 = ssub.s32 1, %s9
  %s12 = scalar_select 0, %s11, %s9
  $region1: #{tpu_custom_call.1} parent=0
    #allocation2 [shape = 'u8[4096]{0}', space=vmem, size = 0x1000, scoped, tag = 'input window, operand 0, single buffered']
    #allocation3 [shape = 's32[1]{0}', space=sflag, size = 0x4, scoped, tag = 'scoped memory for tpu_custom_call.1']
    #allocation4 [shape = 's32[1]{0}', space=sflag, size = 0x4, scoped, tag = 'scoped memory for tpu_custom_call.1']
    #allocation5 [shape = 'u8[65536]{0}', space=vmem, size = 0x10000, scoped, tag = 'input window, operand 1, single buffered']
    #allocation6 [shape = 's32[1]{0}', space=sflag, size = 0x4, scoped, tag = 'scoped memory for tpu_custom_call.1']
    #allocation7 [shape = 'u8[32768]{0}', space=vmem, size = 0x8000, scoped, tag = 'input window, operand 2, single buffered']
    #allocation8 [shape = 'u8[8192]{0}', space=vmem, size = 0x2000, scoped, tag = 'input window, operand 3, single buffered']
    #allocation9 [shape = 's32[1]{0}', space=sflag, size = 0x4, scoped, tag = 'scoped memory for tpu_custom_call.1']
    #allocation10 [shape = 'u8[65536]{0}', space=vmem, size = 0x10000, scoped, tag = 'input window, operand 4, single buffered']
    #allocation11 [shape = 'u8[32768]{0}', space=vmem, size = 0x8000, scoped, tag = 'input window, operand 5, single buffered']
    #allocation12 [shape = 's32[1]{0}', space=sflag, size = 0x4, scoped, tag = 'scoped memory for tpu_custom_call.1']
    #allocation13 [shape = 'u8[8192]{0}', space=vmem, size = 0x2000, scoped, tag = 'input window, operand 6, single buffered']
    #allocation14 [shape = 'u8[32768]{0}', space=vmem, size = 0x8000, scoped, tag = 'input window, operand 7, single buffered']
    #allocation15 [shape = 's32[1]{0}', space=sflag, size = 0x4, scoped, tag = 'scoped memory for tpu_custom_call.1']
    #allocation16 [shape = 'u8[4096]{0}', space=vmem, size = 0x1000, scoped, tag = 'output window, operand 0, single buffered']
    %13 = vsyncpa [#allocation3], 0
    %14 = vsyncpa [#allocation6], 0
    %15 = vsyncpa [#allocation9], 0
    %16 = vsyncpa [#allocation12], 0
    %17 = vsyncpa [#allocation15], 0
    %18 = vsyncpa [#allocation4], 0
    // Predicated region
    $region2: #{tpu_custom_call.1} parent=1 // pred_check
      _
    $region3: #{tpu_custom_call.1} parent=1 // pred_check_branch
      %20 = sbr.rel (0) target = $region5
    $region4: #{tpu_custom_call.1} parent=1 // pred_region
      %22 = vsyncadd [#allocation3], 0
      %s24 = sshll.u32 %s0, 4
      %s25 = int_to_ptr.hbm [resolvable:$true] %s24
      %s26 = sshll.u32 [#allocation2], 4
      %s27 = int_to_ptr.vmem [resolvable:$true] %s26
      %29 = dma.hbm_to_vmem [thread:$0]  %s25, 128, %s27, [#allocation3]
    $region5: #{tpu_custom_call.1} parent=1 // pred_fallthru
      _
    // Predicated region
    $region6: #{tpu_custom_call.1} parent=1 // pred_check
      _
    $region7: #{tpu_custom_call.1} parent=1 // pred_check_branch
      %31 = sbr.rel (0) target = $region9
    $region8: #{tpu_custom_call.1} parent=1 // pred_region
      %33 = vsyncadd [#allocation6], 0
      %s34 = sshll.u32 %s1, 4
      %s35 = int_to_ptr.hbm [resolvable:$true] %s34
      %s36 = sshll.u32 [#allocation5], 4
      %s37 = int_to_ptr.vmem [resolvable:$true] %s36
      %42 = dma.hbm_to_vmem [thread:$0]  %s35, 2048, %s37, [#allocation6], 128, 128, 8
    $region9: #{tpu_custom_call.1} parent=1 // pred_fallthru
      _
    // Predicated region
    $region10: #{tpu_custom_call.1} parent=1 // pred_check
      _
    $region11: #{tpu_custom_call.1} parent=1 // pred_check_branch
      %44 = sbr.rel (0) target = $region13
    $region12: #{tpu_custom_call.1} parent=1 // pred_region
      %46 = vsyncadd [#allocation6], 0
      %s47 = sshll.u32 %s2, 4
      %s48 = int_to_ptr.hbm [resolvable:$true] %s47
      %s49 = sshll.u32 [#allocation7], 4
      %s50 = int_to_ptr.vmem [resolvable:$true] %s49
      %55 = dma.hbm_to_vmem [thread:$0]  %s48, 1024, %s50, [#allocation6], 64, 64, 4
    $region13: #{tpu_custom_call.1} parent=1 // pred_fallthru
      _
    // Predicated region
    $region14: #{tpu_custom_call.1} parent=1 // pred_check
      _
    $region15: #{tpu_custom_call.1} parent=1 // pred_check_branch
      %57 = sbr.rel (0) target = $region17
    $region16: #{tpu_custom_call.1} parent=1 // pred_region
      %59 = vsyncadd [#allocation9], 0
      %s61 = sshll.u32 %s3, 4
      %s62 = int_to_ptr.hbm [resolvable:$true] %s61
      %s63 = sshll.u32 [#allocation8], 4
      %s64 = int_to_ptr.vmem [resolvable:$true] %s63
      %66 = dma.hbm_to_vmem [thread:$0]  %s62, 256, %s64, [#allocation9]
    $region17: #{tpu_custom_call.1} parent=1 // pred_fallthru
      _
    // Predicated region
    $region18: #{tpu_custom_call.1} parent=1 // pred_check
      _
    $region19: #{tpu_custom_call.1} parent=1 // pred_check_branch
      %68 = sbr.rel (0) target = $region21
    $region20: #{tpu_custom_call.1} parent=1 // pred_region
      %70 = vsyncadd [#allocation9], 0
      %s71 = sshll.u32 %s4, 4
      %s72 = int_to_ptr.hbm [resolvable:$true] %s71
      %s73 = sshll.u32 [#allocation10], 4
      %s74 = int_to_ptr.vmem [resolvable:$true] %s73
      %79 = dma.hbm_to_vmem [thread:$0]  %s72, 2048, %s74, [#allocation9], 128, 128, 8
    $region21: #{tpu_custom_call.1} parent=1 // pred_fallthru
      _
    // Predicated region
    $region22: #{tpu_custom_call.1} parent=1 // pred_check
      _
    $region23: #{tpu_custom_call.1} parent=1 // pred_check_branch
      %81 = sbr.rel (0) target = $region25
    $region24: #{tpu_custom_call.1} parent=1 // pred_region
      %83 = vsyncadd [#allocation12], 0
      %s84 = sshll.u32 %s5, 4
      %s85 = int_to_ptr.hbm [resolvable:$true] %s84
      %s86 = sshll.u32 [#allocation11], 4
      %s87 = int_to_ptr.vmem [resolvable:$true] %s86
      %92 = dma.hbm_to_vmem [thread:$0]  %s85, 1024, %s87, [#allocation12], 64, 64, 4
    $region25: #{tpu_custom_call.1} parent=1 // pred_fallthru
      _
    // Predicated region
    $region26: #{tpu_custom_call.1} parent=1 // pred_check
      _
    $region27: #{tpu_custom_call.1} parent=1 // pred_check_branch
      %94 = sbr.rel (0) target = $region29
    $region28: #{tpu_custom_call.1} parent=1 // pred_region
      %96 = vsyncadd [#allocation12], 0
      %s98 = sshll.u32 %s6, 4
      %s99 = int_to_ptr.hbm [resolvable:$true] %s98
      %s100 = sshll.u32 [#allocation13], 4
      %s101 = int_to_ptr.vmem [resolvable:$true] %s100
      %103 = dma.hbm_to_vmem [thread:$0]  %s99, 256, %s101, [#allocation12]
    $region29: #{tpu_custom_call.1} parent=1 // pred_fallthru
      _
    // Predicated region
    $region30: #{tpu_custom_call.1} parent=1 // pred_check
      _
    $region31: #{tpu_custom_call.1} parent=1 // pred_check_branch
      %105 = sbr.rel (0) target = $region33
    $region32: #{tpu_custom_call.1} parent=1 // pred_region
      %107 = vsyncadd [#allocation15], 0
      %s108 = sshll.u32 %s7, 4
      %s109 = int_to_ptr.hbm [resolvable:$true] %s108
      %s110 = sshll.u32 [#allocation14], 4
      %s111 = int_to_ptr.vmem [resolvable:$true] %s110
      %116 = dma.hbm_to_vmem [thread:$0]  %s109, 1024, %s111, [#allocation15], 64, 64, 4
    $region33: #{tpu_custom_call.1} parent=1 // pred_fallthru
      _
    // Predicated region
    $region34: #{tpu_custom_call.1} parent=1 // pred_check
      _
    $region35: #{tpu_custom_call.1} parent=1 // pred_check_branch
      %118 = sbr.rel (0) target = $region37
    $region36: #{tpu_custom_call.1} parent=1 // pred_region
      %120 = dma.done [#allocation3], 128
    $region37: #{tpu_custom_call.1} parent=1 // pred_fallthru
      _
    // Predicated region
    $region38: #{tpu_custom_call.1} parent=1 // pred_check
      _
    $region39: #{tpu_custom_call.1} parent=1 // pred_check_branch
      %122 = sbr.rel (0) target = $region41
    $region40: #{tpu_custom_call.1} parent=1 // pred_region
      %124 = dma.done [#allocation6], 2048
    $region41: #{tpu_custom_call.1} parent=1 // pred_fallthru
      _
    // Predicated region
    $region42: #{tpu_custom_call.1} parent=1 // pred_check
      _
    $region43: #{tpu_custom_call.1} parent=1 // pred_check_branch
      %126 = sbr.rel (0) target = $region45
    $region44: #{tpu_custom_call.1} parent=1 // pred_region
      %128 = dma.done [#allocation6], 1024
    $region45: #{tpu_custom_call.1} parent=1 // pred_fallthru
      _
    // Predicated region
    $region46: #{tpu_custom_call.1} parent=1 // pred_check
      _
    $region47: #{tpu_custom_call.1} parent=1 // pred_check_branch
      %130 = sbr.rel (0) target = $region49
    $region48: #{tpu_custom_call.1} parent=1 // pred_region
      %132 = dma.done [#allocation9], 256
    $region49: #{tpu_custom_call.1} parent=1 // pred_fallthru
      _
    // Predicated region
    $region50: #{tpu_custom_call.1} parent=1 // pred_check
      _
    $region51: #{tpu_custom_call.1} parent=1 // pred_check_branch
      %134 = sbr.rel (0) target = $region53
    $region52: #{tpu_custom_call.1} parent=1 // pred_region
      %136 = dma.done [#allocation9], 2048
    $region53: #{tpu_custom_call.1} parent=1 // pred_fallthru
      _
    // Predicated region
    $region54: #{tpu_custom_call.1} parent=1 // pred_check
      _
    $region55: #{tpu_custom_call.1} parent=1 // pred_check_branch
      %138 = sbr.rel (0) target = $region57
    $region56: #{tpu_custom_call.1} parent=1 // pred_region
      %140 = dma.done [#allocation12], 1024
    $region57: #{tpu_custom_call.1} parent=1 // pred_fallthru
      _
    // Predicated region
    $region58: #{tpu_custom_call.1} parent=1 // pred_check
      _
    $region59: #{tpu_custom_call.1} parent=1 // pred_check_branch
      %142 = sbr.rel (0) target = $region61
    $region60: #{tpu_custom_call.1} parent=1 // pred_region
      %144 = dma.done [#allocation12], 256
    $region61: #{tpu_custom_call.1} parent=1 // pred_fallthru
      _
    // Predicated region
    $region62: #{tpu_custom_call.1} parent=1 // pred_check
      _
    $region63: #{tpu_custom_call.1} parent=1 // pred_check_branch
      %146 = sbr.rel (0) target = $region65
    $region64: #{tpu_custom_call.1} parent=1 // pred_region
      %148 = dma.done [#allocation15], 1024
    $region65: #{tpu_custom_call.1} parent=1 // pred_fallthru
      _
    %v149 = vlaneseq
    %v150 = vand.u32 %v149, 127
    %vm151 = vcmp.lt.s32.totalorder %v150, 16
    %v152 = vsel %vm151, 1, 0
    %v153 = vcvt.s32.f32 %v152
    %vm154 = vcmp.lt.s32.totalorder %v150, 32
    %v155 = vsel %vm154, 1, 0
    %v156 = vcvt.s32.f32 %v155
    %vm157 = vcmp.lt.s32.totalorder %v150, 24
    %v158 = vsel %vm157, 1, 0
    %v159 = vcvt.s32.f32 %v158
    %v160 = vld [vmem:[#allocation2] sm:$0xff]
    %161 = vadd.xlane.f32.xlu0 %v160
    %v162 = vpop.xlane.xlu0 %161
    %v163 = vmul.f32 %v162, 0.0625
    %v164 = vsub.f32 %v160, %v163
    %v165 = vmul.f32 %v164, %v153
    %v166 = vmul.f32 %v165, %v165
    %167 = vadd.xlane.f32.xlu0 %v166
    %v168 = vpop.xlane.xlu0 %167
    %v169 = vmul.f32 %v168, 0.0625
    %v170 = vadd.f32 %v169, 1e-05
    %v171 = vrsqrt.pop %v170
    %v172 = vmul.f32 %v171, %v170
    %v173 = vmul.f32 %v172, %v171
    %v174 = vmul.f32 0.5, %v173
    %v175 = vsub.f32 1.5, %v174
    %v176 = vmul.f32 %v171, %v175
    %vm177 = vweird.f32 %v170
    %vm178 = vweird.f32 %v171
    %vm179 = vmor %vm177, %vm178
    %v180 = vsel %vm179, %v171, %v176
    %v181 = vmul.f32 %v165, %v180
    %v182 = vpack.c.bf16 %v181, %v181
    %v183 = vld [vmem:[#allocation8] ss:$8 sm:$0x3]
    %v184 = vld [vmem:[#allocation8 + $0x1] ss:$0 sm:$0xff]
    %v185 = vld [vmem:[#allocation8 + $0xa] ss:$0 sm:$0xff]
    %v186 = vld [vmem:[#allocation8 + $0xb] ss:$0 sm:$0xff]
    %v187 = vld [vmem:[#allocation8 + $0xc] ss:$0 sm:$0xff]
    %v188 = vld [vmem:[#allocation5] sm:$0xff]
    %v189 = vld [vmem:[#allocation5 + $0x8] sm:$0xff]
    %v190 = vld [vmem:[#allocation5 + $0x10] sm:$0xff]
    %v191 = vld [vmem:[#allocation5 + $0x18] sm:$0xff]
    %v192 = vld [vmem:[#allocation5 + $0x20] sm:$0xff]
    %v193 = vld [vmem:[#allocation5 + $0x28] sm:$0xff]
    %v194 = vld [vmem:[#allocation5 + $0x30] sm:$0xff]
    %v195 = vld [vmem:[#allocation5 + $0x38] sm:$0xff]
    %v196 = vld [vmem:[#allocation5 + $0x40] sm:$0xff]
    %v197 = vld [vmem:[#allocation5 + $0x48] sm:$0xff]
    %v198 = vld [vmem:[#allocation5 + $0x50] sm:$0xff]
    %v199 = vld [vmem:[#allocation5 + $0x58] sm:$0xff]
    %v200 = vld [vmem:[#allocation5 + $0x60] sm:$0xff]
    %v201 = vld [vmem:[#allocation5 + $0x68] sm:$0xff]
    %v202 = vld [vmem:[#allocation5 + $0x70] sm:$0xff]
    %v203 = vld [vmem:[#allocation5 + $0x78] sm:$0xff]
    %v205 = vperm.slane %v183, 0
    %v206 = vperm.slane %v183, 1
    %v225 = vunpack.c.l.b16 %v188
    %v226 = vunpack.c.h.b16 %v188
    %v227 = vunpack.c.l.b16 %v189
    %v228 = vunpack.c.h.b16 %v189
    %v229 = vunpack.c.l.b16 %v190
    %v230 = vunpack.c.h.b16 %v190
    %v231 = vunpack.c.l.b16 %v191
    %v232 = vunpack.c.h.b16 %v191
    %v233 = vunpack.c.l.b16 %v192
    %v234 = vunpack.c.h.b16 %v192
    %v235 = vunpack.c.l.b16 %v193
    %v236 = vunpack.c.h.b16 %v193
    %v237 = vunpack.c.l.b16 %v194
    %v238 = vunpack.c.h.b16 %v194
    %v239 = vunpack.c.l.b16 %v195
    %v240 = vunpack.c.h.b16 %v195
    %v241 = vunpack.c.l.b16 %v196
    %v242 = vunpack.c.h.b16 %v196
    %v243 = vunpack.c.l.b16 %v197
    %v244 = vunpack.c.h.b16 %v197
    %v245 = vunpack.c.l.b16 %v198
    %v246 = vunpack.c.h.b16 %v198
    %v247 = vunpack.c.l.b16 %v199
    %v248 = vunpack.c.h.b16 %v199
    %v249 = vunpack.c.l.b16 %v200
    %v250 = vunpack.c.h.b16 %v200
    %v251 = vunpack.c.l.b16 %v201
    %v252 = vunpack.c.h.b16 %v201
    %v253 = vunpack.c.l.b16 %v202
    %v254 = vunpack.c.h.b16 %v202
    %v255 = vunpack.c.l.b16 %v203
    %v256 = vunpack.c.h.b16 %v203
    %v257 = vpack.c.b16 %v227, %v225
    %v258 = vpack.c.b16 %v228, %v226
    %v259 = vpack.c.b16 %v231, %v229
    %v260 = vpack.c.b16 %v232, %v230
    %v261 = vpack.c.b16 %v235, %v233
    %v262 = vpack.c.b16 %v236, %v234
    %v263 = vpack.c.b16 %v239, %v237
    %v264 = vpack.c.b16 %v240, %v238
    %v265 = vpack.c.b16 %v243, %v241
    %v266 = vpack.c.b16 %v244, %v242
    %v267 = vpack.c.b16 %v247, %v245
    %v268 = vpack.c.b16 %v248, %v246
    %v269 = vpack.c.b16 %v251, %v249
    %v270 = vpack.c.b16 %v252, %v250
    %v271 = vpack.c.b16 %v255, %v253
    %v272 = vpack.c.b16 %v256, %v254
    %289 = vmatpush.bf16.msra.mxu0 %v271
    %290 = vmatpush.bf16.msra.mxu0 %v269
    %291 = vmatpush.bf16.msra.mxu0 %v267
    %292 = vmatpush.bf16.msra.mxu0 %v265
    %293 = vmatpush.bf16.msra.mxu0 %v263
    %294 = vmatpush.bf16.msra.mxu0 %v261
    %295 = vmatpush.bf16.msra.mxu0 %v259
    %296 = vmatpush.bf16.msra.mxu0 %v257
    %297 = vmatmul.bf16.gmra.mxu0 %v182
    %v298 = vpop.f32.mrf.mxu0
    %v299 = vadd.f32 %v205, %v298
    %v300 = vpop.f32.mrf.mxu0
    %301 = vdwg.mxu0
    %302 = vmatpush.bf16.msra.mxu0 %v272
    %303 = vmatpush.bf16.msra.mxu0 %v270
    %304 = vmatpush.bf16.msra.mxu0 %v268
    %305 = vmatpush.bf16.msra.mxu0 %v266
    %306 = vmatpush.bf16.msra.mxu0 %v264
    %307 = vmatpush.bf16.msra.mxu0 %v262
    %308 = vmatpush.bf16.msra.mxu0 %v260
    %309 = vmatpush.bf16.msra.mxu0 %v258
    %310 = vmatmul.bf16.gmra.mxu0 %v182
    %v311 = vpop.f32.mrf.mxu0
    %v312 = vadd.f32 %v206, %v311
    %v313 = vpop.f32.mrf.mxu0
    %314 = vdwg.mxu0
    %v315 = vsub.f32 %v312, %v186
    %v316 = vmul.f32 %v315, %v185
    %vm317 = vcmp.ge.f32.partialorder %v316, 0.0
    %vm318 = vcmp.lt.f32.partialorder %v316, 1.0
    %vm319 = vmand %vm317, %vm318
    %vm320 = vcmp.lt.f32.partialorder %v316, 0.5
    %v321 = vsel %vm320, 0.8413448, -0.15865526
    %v322 = vsel %vm319, %v321, 0.0
    %v323 = vmul.f32 %v187, %v322
    %v324 = vpack.c.bf16 %v323, %v323
    %v325 = vld [vmem:[#allocation7] sm:$0xf]
    %v326 = vld [vmem:[#allocation7 + $0x4] sm:$0xf]
    %v327 = vld [vmem:[#allocation7 + $0x8] sm:$0xf]
    %v328 = vld [vmem:[#allocation7 + $0xc] sm:$0xf]
    %v329 = vld [vmem:[#allocation7 + $0x10] sm:$0xf]
    %v330 = vld [vmem:[#allocation7 + $0x14] sm:$0xf]
    %v331 = vld [vmem:[#allocation7 + $0x18] sm:$0xf]
    %v332 = vld [vmem:[#allocation7 + $0x1c] sm:$0xf]
    %v333 = vld [vmem:[#allocation7 + $0x20] sm:$0xf]
    %v334 = vld [vmem:[#allocation7 + $0x24] sm:$0xf]
    %v335 = vld [vmem:[#allocation7 + $0x28] sm:$0xf]
    %v336 = vld [vmem:[#allocation7 + $0x2c] sm:$0xf]
    %v337 = vld [vmem:[#allocation7 + $0x30] sm:$0xf]
    %v338 = vld [vmem:[#allocation7 + $0x34] sm:$0xf]
    %v339 = vld [vmem:[#allocation7 + $0x38] sm:$0xf]
    %v340 = vld [vmem:[#allocation7 + $0x3c] sm:$0xf]
    %v357 = vunpack.c.l.b16 %v325
    %v358 = vunpack.c.l.b16 %v326
    %v359 = vunpack.c.l.b16 %v327
    %v360 = vunpack.c.l.b16 %v328
    %v361 = vunpack.c.l.b16 %v329
    %v362 = vunpack.c.l.b16 %v330
    %v363 = vunpack.c.l.b16 %v331
    %v364 = vunpack.c.l.b16 %v332
    %v365 = vunpack.c.l.b16 %v333
    %v366 = vunpack.c.l.b16 %v334
    %v367 = vunpack.c.l.b16 %v335
    %v368 = vunpack.c.l.b16 %v336
    %v369 = vunpack.c.l.b16 %v337
    %v370 = vunpack.c.l.b16 %v338
    %v371 = vunpack.c.l.b16 %v339
    %v372 = vunpack.c.l.b16 %v340
    %v373 = vpack.c.b16 %v358, %v357
    %v374 = vpack.c.b16 %v360, %v359
    %v375 = vpack.c.b16 %v362, %v361
    %v376 = vpack.c.b16 %v364, %v363
    %v377 = vpack.c.b16 %v366, %v365
    %v378 = vpack.c.b16 %v368, %v367
    %v379 = vpack.c.b16 %v370, %v369
    %v380 = vpack.c.b16 %v372, %v371
    %389 = vmatpush.bf16.msra.mxu0 %v380
    %390 = vmatpush.bf16.msra.mxu0 %v379
    %391 = vmatpush.bf16.msra.mxu0 %v378
    %392 = vmatpush.bf16.msra.mxu0 %v377
    %393 = vmatpush.bf16.msra.mxu0 %v376
    %394 = vmatpush.bf16.msra.mxu0 %v375
    %395 = vmatpush.bf16.msra.mxu0 %v374
    %396 = vmatpush.bf16.msra.mxu0 %v373
    %397 = vmatmul.bf16.gmra.mxu0 %v324
    %v398 = vpop.f32.mrf.mxu0
    %v399 = vadd.f32 %v184, %v398
    %v400 = vpop.f32.mrf.mxu0
    %401 = vdwg.mxu0
    %v402 = vadd.f32 %v299, %v399
    %403 = vadd.xlane.f32.xlu0 %v402
    %v404 = vpop.xlane.xlu0 %403
    %v405 = vmul.f32 %v404, 0.03125
    %v406 = vsub.f32 %v402, %v405
    %v407 = vmul.f32 %v406, %v156
    %v408 = vmul.f32 %v407, %v407
    %409 = vadd.xlane.f32.xlu0 %v408
    %v410 = vpop.xlane.xlu0 %409
    %v411 = vmul.f32 %v410, 0.03125
    %v412 = vadd.f32 %v411, 1e-05
    %v413 = vrsqrt.pop %v412
    %v414 = vmul.f32 %v413, %v412
    %v415 = vmul.f32 %v414, %v413
    %v416 = vmul.f32 0.5, %v415
    %v417 = vsub.f32 1.5, %v416
    %v418 = vmul.f32 %v413, %v417
    %vm419 = vweird.f32 %v412
    %vm420 = vweird.f32 %v413
    %vm421 = vmor %vm419, %vm420
    %v422 = vsel %vm421, %v413, %v418
    %v423 = vmul.f32 %v407, %v422
    %v424 = vmul.f32 %v423, 0.5
    %v425 = vmul.f32 %v423, 0.70710677
    %vm426 = vcmp.ge.f32.partialorder %v425, 0.0
    %v427 = vsel %vm426, 1.0, -1.0
    %v428 = vand.u32 2147483647, %v425
    %v429 = vmul.f32 %v428, 0.3275911
    %v430 = vadd.f32 %v429, 1.0
    %v431 = vrcp.pop %v430
    %v432 = vmul.f32 %v430, %v431
    %v433 = vsub.f32 2.0, %v432
    %v434 = vmul.f32 %v431, %v433
    %v435 = vmul.f32 %v434, 1.0614054
    %v436 = vadd.f32 %v435, -1.4531521
    %v437 = vmul.f32 %v436, %v434
    %v438 = vadd.f32 %v437, 1.4214138
    %v439 = vmul.f32 %v438, %v434
    %v440 = vadd.f32 %v439, -0.28449672
    %v441 = vmul.f32 %v440, %v434
    %v442 = vadd.f32 %v441, 0.2548296
    %v443 = vmul.f32 %v442, %v434
    %v444 = vsub.f32 0.0, %v428
    %v445 = vmul.f32 %v444, %v428
    %v446 = vmul.f32 %v445, 1.442695
    %v447 = vpow.pop %v446
    %v448 = vmul.f32 %v443, %v447
    %v449 = vsub.f32 1.0, %v448
    %v450 = vmul.f32 %v427, %v449
    %v451 = vadd.f32 %v450, 1.0
    %v452 = vmul.f32 %v424, %v451
    %453 = vadd.xlane.f32.xlu0 %v452
    %v454 = vpop.xlane.xlu0 %453
    %v455 = vmul.f32 %v454, 0.03125
    %v456 = vsub.f32 %v452, %v455
    %v457 = vmul.f32 %v456, %v156
    %v458 = vmul.f32 %v457, %v457
    %459 = vadd.xlane.f32.xlu0 %v458
    %v460 = vpop.xlane.xlu0 %459
    %v461 = vmul.f32 %v460, 0.03125
    %v462 = vadd.f32 %v461, 1e-05
    %v463 = vrsqrt.pop %v462
    %v464 = vmul.f32 %v463, %v462
    %v465 = vmul.f32 %v464, %v463
    %v466 = vmul.f32 0.5, %v465
    %v467 = vsub.f32 1.5, %v466
    %v468 = vmul.f32 %v463, %v467
    %vm469 = vweird.f32 %v462
    %vm470 = vweird.f32 %v463
    %vm471 = vmor %vm469, %vm470
    %v472 = vsel %vm471, %v463, %v468
    %v473 = vmul.f32 %v457, %v472
    %v474 = vpack.c.bf16 %v473, %v473
    %v475 = vld [vmem:[#allocation13] ss:$8 sm:$0x3]
    %v476 = vld [vmem:[#allocation13 + $0x1] ss:$0 sm:$0xff]
    %v477 = vld [vmem:[#allocation13 + $0xa] ss:$0 sm:$0xff]
    %v478 = vld [vmem:[#allocation13 + $0xb] ss:$0 sm:$0xff]
    %v479 = vld [vmem:[#allocation13 + $0xc] ss:$0 sm:$0xff]
    %v480 = vld [vmem:[#allocation10] sm:$0xff]
    %v481 = vld [vmem:[#allocation10 + $0x8] sm:$0xff]
    %v482 = vld [vmem:[#allocation10 + $0x10] sm:$0xff]
    %v483 = vld [vmem:[#allocation10 + $0x18] sm:$0xff]
    %v484 = vld [vmem:[#allocation10 + $0x20] sm:$0xff]
    %v485 = vld [vmem:[#allocation10 + $0x28] sm:$0xff]
    %v486 = vld [vmem:[#allocation10 + $0x30] sm:$0xff]
    %v487 = vld [vmem:[#allocation10 + $0x38] sm:$0xff]
    %v488 = vld [vmem:[#allocation10 + $0x40] sm:$0xff]
    %v489 = vld [vmem:[#allocation10 + $0x48] sm:$0xff]
    %v490 = vld [vmem:[#allocation10 + $0x50] sm:$0xff]
    %v491 = vld [vmem:[#allocation10 + $0x58] sm:$0xff]
    %v492 = vld [vmem:[#allocation10 + $0x60] sm:$0xff]
    %v493 = vld [vmem:[#allocation10 + $0x68] sm:$0xff]
    %v494 = vld [vmem:[#allocation10 + $0x70] sm:$0xff]
    %v495 = vld [vmem:[#allocation10 + $0x78] sm:$0xff]
    %v497 = vperm.slane %v475, 0
    %v498 = vperm.slane %v475, 1
    %v517 = vunpack.c.l.b16 %v480
    %v518 = vunpack.c.h.b16 %v480
    %v519 = vunpack.c.l.b16 %v481
    %v520 = vunpack.c.h.b16 %v481
    %v521 = vunpack.c.l.b16 %v482
    %v522 = vunpack.c.h.b16 %v482
    %v523 = vunpack.c.l.b16 %v483
    %v524 = vunpack.c.h.b16 %v483
    %v525 = vunpack.c.l.b16 %v484
    %v526 = vunpack.c.h.b16 %v484
    %v527 = vunpack.c.l.b16 %v485
    %v528 = vunpack.c.h.b16 %v485
    %v529 = vunpack.c.l.b16 %v486
    %v530 = vunpack.c.h.b16 %v486
    %v531 = vunpack.c.l.b16 %v487
    %v532 = vunpack.c.h.b16 %v487
    %v533 = vunpack.c.l.b16 %v488
    %v534 = vunpack.c.h.b16 %v488
    %v535 = vunpack.c.l.b16 %v489
    %v536 = vunpack.c.h.b16 %v489
    %v537 = vunpack.c.l.b16 %v490
    %v538 = vunpack.c.h.b16 %v490
    %v539 = vunpack.c.l.b16 %v491
    %v540 = vunpack.c.h.b16 %v491
    %v541 = vunpack.c.l.b16 %v492
    %v542 = vunpack.c.h.b16 %v492
    %v543 = vunpack.c.l.b16 %v493
    %v544 = vunpack.c.h.b16 %v493
    %v545 = vunpack.c.l.b16 %v494
    %v546 = vunpack.c.h.b16 %v494
    %v547 = vunpack.c.l.b16 %v495
    %v548 = vunpack.c.h.b16 %v495
    %v549 = vpack.c.b16 %v519, %v517
    %v550 = vpack.c.b16 %v520, %v518
    %v551 = vpack.c.b16 %v523, %v521
    %v552 = vpack.c.b16 %v524, %v522
    %v553 = vpack.c.b16 %v527, %v525
    %v554 = vpack.c.b16 %v528, %v526
    %v555 = vpack.c.b16 %v531, %v529
    %v556 = vpack.c.b16 %v532, %v530
    %v557 = vpack.c.b16 %v535, %v533
    %v558 = vpack.c.b16 %v536, %v534
    %v559 = vpack.c.b16 %v539, %v537
    %v560 = vpack.c.b16 %v540, %v538
    %v561 = vpack.c.b16 %v543, %v541
    %v562 = vpack.c.b16 %v544, %v542
    %v563 = vpack.c.b16 %v547, %v545
    %v564 = vpack.c.b16 %v548, %v546
    %581 = vmatpush.bf16.msra.mxu0 %v563
    %582 = vmatpush.bf16.msra.mxu0 %v561
    %583 = vmatpush.bf16.msra.mxu0 %v559
    %584 = vmatpush.bf16.msra.mxu0 %v557
    %585 = vmatpush.bf16.msra.mxu0 %v555
    %586 = vmatpush.bf16.msra.mxu0 %v553
    %587 = vmatpush.bf16.msra.mxu0 %v551
    %588 = vmatpush.bf16.msra.mxu0 %v549
    %589 = vmatmul.bf16.gmra.mxu0 %v474
    %v590 = vpop.f32.mrf.mxu0
    %v591 = vadd.f32 %v497, %v590
    %v592 = vpop.f32.mrf.mxu0
    %593 = vdwg.mxu0
    %594 = vmatpush.bf16.msra.mxu0 %v564
    %595 = vmatpush.bf16.msra.mxu0 %v562
    %596 = vmatpush.bf16.msra.mxu0 %v560
    %597 = vmatpush.bf16.msra.mxu0 %v558
    %598 = vmatpush.bf16.msra.mxu0 %v556
    %599 = vmatpush.bf16.msra.mxu0 %v554
    %600 = vmatpush.bf16.msra.mxu0 %v552
    %601 = vmatpush.bf16.msra.mxu0 %v550
    %602 = vmatmul.bf16.gmra.mxu0 %v474
    %v603 = vpop.f32.mrf.mxu0
    %v604 = vadd.f32 %v498, %v603
    %v605 = vpop.f32.mrf.mxu0
    %606 = vdwg.mxu0
    %v607 = vsub.f32 %v604, %v478
    %v608 = vmul.f32 %v607, %v477
    %vm609 = vcmp.ge.f32.partialorder %v608, 0.0
    %vm610 = vcmp.lt.f32.partialorder %v608, 1.0
    %vm611 = vmand %vm609, %vm610
    %vm612 = vcmp.lt.f32.partialorder %v608, 0.5
    %v613 = vsel %vm612, 0.8413448, -0.15865526
    %v614 = vsel %vm611, %v613, 0.0
    %v615 = vmul.f32 %v479, %v614
    %v616 = vpack.c.bf16 %v615, %v615
    %v617 = vld [vmem:[#allocation11] sm:$0xf]
    %v618 = vld [vmem:[#allocation11 + $0x4] sm:$0xf]
    %v619 = vld [vmem:[#allocation11 + $0x8] sm:$0xf]
    %v620 = vld [vmem:[#allocation11 + $0xc] sm:$0xf]
    %v621 = vld [vmem:[#allocation11 + $0x10] sm:$0xf]
    %v622 = vld [vmem:[#allocation11 + $0x14] sm:$0xf]
    %v623 = vld [vmem:[#allocation11 + $0x18] sm:$0xf]
    %v624 = vld [vmem:[#allocation11 + $0x1c] sm:$0xf]
    %v625 = vld [vmem:[#allocation11 + $0x20] sm:$0xf]
    %v626 = vld [vmem:[#allocation11 + $0x24] sm:$0xf]
    %v627 = vld [vmem:[#allocation11 + $0x28] sm:$0xf]
    %v628 = vld [vmem:[#allocation11 + $0x2c] sm:$0xf]
    %v629 = vld [vmem:[#allocation11 + $0x30] sm:$0xf]
    %v630 = vld [vmem:[#allocation11 + $0x34] sm:$0xf]
    %v631 = vld [vmem:[#allocation11 + $0x38] sm:$0xf]
    %v632 = vld [vmem:[#allocation11 + $0x3c] sm:$0xf]
    %v649 = vunpack.c.l.b16 %v617
    %v650 = vunpack.c.l.b16 %v618
    %v651 = vunpack.c.l.b16 %v619
    %v652 = vunpack.c.l.b16 %v620
    %v653 = vunpack.c.l.b16 %v621
    %v654 = vunpack.c.l.b16 %v622
    %v655 = vunpack.c.l.b16 %v623
    %v656 = vunpack.c.l.b16 %v624
    %v657 = vunpack.c.l.b16 %v625
    %v658 = vunpack.c.l.b16 %v626
    %v659 = vunpack.c.l.b16 %v627
    %v660 = vunpack.c.l.b16 %v628
    %v661 = vunpack.c.l.b16 %v629
    %v662 = vunpack.c.l.b16 %v630
    %v663 = vunpack.c.l.b16 %v631
    %v664 = vunpack.c.l.b16 %v632
    %v665 = vpack.c.b16 %v650, %v649
    %v666 = vpack.c.b16 %v652, %v651
    %v667 = vpack.c.b16 %v654, %v653
    %v668 = vpack.c.b16 %v656, %v655
    %v669 = vpack.c.b16 %v658, %v657
    %v670 = vpack.c.b16 %v660, %v659
    %v671 = vpack.c.b16 %v662, %v661
    %v672 = vpack.c.b16 %v664, %v663
    %681 = vmatpush.bf16.msra.mxu0 %v672
    %682 = vmatpush.bf16.msra.mxu0 %v671
    %683 = vmatpush.bf16.msra.mxu0 %v670
    %684 = vmatpush.bf16.msra.mxu0 %v669
    %685 = vmatpush.bf16.msra.mxu0 %v668
    %686 = vmatpush.bf16.msra.mxu0 %v667
    %687 = vmatpush.bf16.msra.mxu0 %v666
    %688 = vmatpush.bf16.msra.mxu0 %v665
    %689 = vmatmul.bf16.gmra.mxu0 %v616
    %v690 = vpop.f32.mrf.mxu0
    %v691 = vadd.f32 %v476, %v690
    %v692 = vpop.f32.mrf.mxu0
    %693 = vdwg.mxu0
    %v694 = vadd.f32 %v591, %v691
    %695 = vadd.xlane.f32.xlu0 %v694
    %v696 = vpop.xlane.xlu0 %695
    %v697 = vmul.f32 %v696, 0.041666668
    %v698 = vsub.f32 %v694, %v697
    %v699 = vmul.f32 %v698, %v159
    %v700 = vmul.f32 %v699, %v699
    %701 = vadd.xlane.f32.xlu0 %v700
    %v702 = vpop.xlane.xlu0 %701
    %v703 = vmul.f32 %v702, 0.041666668
    %v704 = vadd.f32 %v703, 1e-05
    %v705 = vrsqrt.pop %v704
    %v706 = vmul.f32 %v705, %v704
    %v707 = vmul.f32 %v706, %v705
    %v708 = vmul.f32 0.5, %v707
    %v709 = vsub.f32 1.5, %v708
    %v710 = vmul.f32 %v705, %v709
    %vm711 = vweird.f32 %v704
    %vm712 = vweird.f32 %v705
    %vm713 = vmor %vm711, %vm712
    %v714 = vsel %vm713, %v705, %v710
    %v715 = vmul.f32 %v699, %v714
    %v716 = vpack.c.bf16 %v160, %v160
    %v717 = vld [vmem:[#allocation14] sm:$0xf]
    %v718 = vld [vmem:[#allocation14 + $0x4] sm:$0xf]
    %v719 = vld [vmem:[#allocation14 + $0x8] sm:$0xf]
    %v720 = vld [vmem:[#allocation14 + $0xc] sm:$0xf]
    %v721 = vld [vmem:[#allocation14 + $0x10] sm:$0xf]
    %v722 = vld [vmem:[#allocation14 + $0x14] sm:$0xf]
    %v723 = vld [vmem:[#allocation14 + $0x18] sm:$0xf]
    %v724 = vld [vmem:[#allocation14 + $0x1c] sm:$0xf]
    %v725 = vld [vmem:[#allocation14 + $0x20] sm:$0xf]
    %v726 = vld [vmem:[#allocation14 + $0x24] sm:$0xf]
    %v727 = vld [vmem:[#allocation14 + $0x28] sm:$0xf]
    %v728 = vld [vmem:[#allocation14 + $0x2c] sm:$0xf]
    %v729 = vld [vmem:[#allocation14 + $0x30] sm:$0xf]
    %v730 = vld [vmem:[#allocation14 + $0x34] sm:$0xf]
    %v731 = vld [vmem:[#allocation14 + $0x38] sm:$0xf]
    %v732 = vld [vmem:[#allocation14 + $0x3c] sm:$0xf]
    %v733 = vld [vmem:[#allocation13 + $0x5] ss:$0 sm:$0xff]
    %v750 = vunpack.c.l.b16 %v717
    %v751 = vunpack.c.l.b16 %v718
    %v752 = vunpack.c.l.b16 %v719
    %v753 = vunpack.c.l.b16 %v720
    %v754 = vunpack.c.l.b16 %v721
    %v755 = vunpack.c.l.b16 %v722
    %v756 = vunpack.c.l.b16 %v723
    %v757 = vunpack.c.l.b16 %v724
    %v758 = vunpack.c.l.b16 %v725
    %v759 = vunpack.c.l.b16 %v726
    %v760 = vunpack.c.l.b16 %v727
    %v761 = vunpack.c.l.b16 %v728
    %v762 = vunpack.c.l.b16 %v729
    %v763 = vunpack.c.l.b16 %v730
    %v764 = vunpack.c.l.b16 %v731
    %v765 = vunpack.c.l.b16 %v732
    %v766 = vpack.c.b16 %v751, %v750
    %v767 = vpack.c.b16 %v753, %v752
    %v768 = vpack.c.b16 %v755, %v754
    %v769 = vpack.c.b16 %v757, %v756
    %v770 = vpack.c.b16 %v759, %v758
    %v771 = vpack.c.b16 %v761, %v760
    %v772 = vpack.c.b16 %v763, %v762
    %v773 = vpack.c.b16 %v765, %v764
    %782 = vmatpush.bf16.msra.mxu0 %v773
    %783 = vmatpush.bf16.msra.mxu0 %v772
    %784 = vmatpush.bf16.msra.mxu0 %v771
    %785 = vmatpush.bf16.msra.mxu0 %v770
    %786 = vmatpush.bf16.msra.mxu0 %v769
    %787 = vmatpush.bf16.msra.mxu0 %v768
    %788 = vmatpush.bf16.msra.mxu0 %v767
    %789 = vmatpush.bf16.msra.mxu0 %v766
    %790 = vmatmul.bf16.gmra.mxu0 %v716
    %v791 = vpop.f32.mrf.mxu0
    %v792 = vadd.f32 %v733, %v791
    %v793 = vpop.f32.mrf.mxu0
    %794 = vdwg.mxu0
    %v795 = vadd.f32 %v715, %v792
    %796 = vst [vmem:[#allocation16] sm:$0xff] %v795
    // Predicated region
    $region66: #{tpu_custom_call.1} parent=1 // pred_check
      _
    $region67: #{tpu_custom_call.1} parent=1 // pred_check_branch
      %798 = sbr.rel (0) target = $region69
    $region68: #{tpu_custom_call.1} parent=1 // pred_region
      %800 = vsyncadd [#allocation4], 0
      %s802 = sshll.u32 [#allocation16], 4
      %s803 = int_to_ptr.vmem [resolvable:$true] %s802
      %s804 = sshll.u32 %s8, 4
      %s805 = int_to_ptr.hbm [resolvable:$true] %s804
      %807 = dma.vmem_to_hbm [thread:$0]  %s803, 128, %s805, [#allocation4]
    $region69: #{tpu_custom_call.1} parent=1 // pred_fallthru
      _
    // Predicated region
    $region70: #{tpu_custom_call.1} parent=1 // pred_check
      _
    $region71: #{tpu_custom_call.1} parent=1 // pred_check_branch
      %809 = sbr.rel (0) target = $region73
    $region72: #{tpu_custom_call.1} parent=1 // pred_region
      %811 = dma.done [#allocation4], 128
    $region73: #{tpu_custom_call.1} parent=1 // pred_fallthru
      _
    %812 = vsyncpa [#allocation3], 1
    %813 = vsyncpa [#allocation6], 1
    %814 = vsyncpa [#allocation9], 1
    %815 = vsyncpa [#allocation12], 1
    %816 = vsyncpa [#allocation15], 1
    %817 = vsyncpa [#allocation4], 1

// kernel: tpu_custom_call.1
$region0: #{tpu_custom_call.1}
  #allocation0 [shape = 'u32[]', space=smem, size = 0x4, offset = 0x4, fixed_abs, tag = 'smem constant byte address 0x4 - core index']
  #allocation1 [shape = 'u32[72,128]{1,0:T(1,128)}', space=vmem, size = 0x9000, scoped, tag = 'internal scratch']
  %s0 = inlined_call_operand.hbm [shape: f32[8,128], index: 0, kind: input, shape index: {}]
  %s1 = inlined_call_operand.hbm [shape: bf16[128,256], index: 1, kind: input, shape index: {}]
  %s2 = inlined_call_operand.hbm [shape: bf16[128,128], index: 2, kind: input, shape index: {}]
  %s3 = inlined_call_operand.hbm [shape: f32[8,256], index: 3, kind: input, shape index: {}]
  %s4 = inlined_call_operand.hbm [shape: bf16[128,256], index: 4, kind: input, shape index: {}]
  %s5 = inlined_call_operand.hbm [shape: bf16[128,128], index: 5, kind: input, shape index: {}]
  %s6 = inlined_call_operand.hbm [shape: f32[8,256], index: 6, kind: input, shape index: {}]
  %s7 = inlined_call_operand.hbm [shape: bf16[128,128], index: 7, kind: input, shape index: {}]
  %s8 = inlined_call_operand.hbm [shape: f32[8,128], index: 8, kind: output, shape index: {}]
  %s9 = sld [smem:[#allocation0]]
  $region74: #{tpu_custom_call.1} parent=0
    _
  %s11 = ssub.s32 1, %s9
  %s12 = scalar_select 0, %s11, %s9
  $region1: #{tpu_custom_call.1} parent=0
    #allocation2 [shape = 'u8[4096]{0}', space=vmem, size = 0x1000, scoped, tag = 'input window, operand 0, single buffered']
    #allocation3 [shape = 's32[1]{0}', space=sflag, size = 0x4, scoped, tag = 'scoped memory for tpu_custom_call.1']
    #allocation4 [shape = 's32[1]{0}', space=sflag, size = 0x4, scoped, tag = 'scoped memory for tpu_custom_call.1']
    #allocation5 [shape = 'u8[65536]{0}', space=vmem, size = 0x10000, scoped, tag = 'input window, operand 1, single buffered']
    #allocation6 [shape = 's32[1]{0}', space=sflag, size = 0x4, scoped, tag = 'scoped memory for tpu_custom_call.1']
    #allocation7 [shape = 'u8[32768]{0}', space=vmem, size = 0x8000, scoped, tag = 'input window, operand 2, single buffered']
    #allocation8 [shape = 'u8[8192]{0}', space=vmem, size = 0x2000, scoped, tag = 'input window, operand 3, single buffered']
    #allocation9 [shape = 's32[1]{0}', space=sflag, size = 0x4, scoped, tag = 'scoped memory for tpu_custom_call.1']
    #allocation10 [shape = 'u8[65536]{0}', space=vmem, size = 0x10000, scoped, tag = 'input window, operand 4, single buffered']
    #allocation11 [shape = 'u8[32768]{0}', space=vmem, size = 0x8000, scoped, tag = 'input window, operand 5, single buffered']
    #allocation12 [shape = 's32[1]{0}', space=sflag, size = 0x4, scoped, tag = 'scoped memory for tpu_custom_call.1']
    #allocation13 [shape = 'u8[8192]{0}', space=vmem, size = 0x2000, scoped, tag = 'input window, operand 6, single buffered']
    #allocation14 [shape = 'u8[32768]{0}', space=vmem, size = 0x8000, scoped, tag = 'input window, operand 7, single buffered']
    #allocation15 [shape = 's32[1]{0}', space=sflag, size = 0x4, scoped, tag = 'scoped memory for tpu_custom_call.1']
    #allocation16 [shape = 'u8[4096]{0}', space=vmem, size = 0x1000, scoped, tag = 'output window, operand 0, single buffered']
    %13 = vsyncpa [#allocation3], 0
    %14 = vsyncpa [#allocation6], 0
    %15 = vsyncpa [#allocation9], 0
    %16 = vsyncpa [#allocation12], 0
    %17 = vsyncpa [#allocation15], 0
    %18 = vsyncpa [#allocation4], 0
    // Predicated region
    $region2: #{tpu_custom_call.1} parent=1 // pred_check
      _
    $region3: #{tpu_custom_call.1} parent=1 // pred_check_branch
      %20 = sbr.rel (0) target = $region5
    $region4: #{tpu_custom_call.1} parent=1 // pred_region
      %22 = vsyncadd [#allocation3], 0
      %s24 = sshll.u32 %s0, 4
      %s25 = int_to_ptr.hbm [resolvable:$true] %s24
      %s26 = sshll.u32 [#allocation2], 4
      %s27 = int_to_ptr.vmem [resolvable:$true] %s26
      %29 = dma.hbm_to_vmem [thread:$0]  %s25, 128, %s27, [#allocation3]
    $region5: #{tpu_custom_call.1} parent=1 // pred_fallthru
      _
    // Predicated region
    $region6: #{tpu_custom_call.1} parent=1 // pred_check
      _
    $region7: #{tpu_custom_call.1} parent=1 // pred_check_branch
      %31 = sbr.rel (0) target = $region9
    $region8: #{tpu_custom_call.1} parent=1 // pred_region
      %33 = vsyncadd [#allocation6], 0
      %s34 = sshll.u32 %s1, 4
      %s35 = int_to_ptr.hbm [resolvable:$true] %s34
      %s36 = sshll.u32 [#allocation5], 4
      %s37 = int_to_ptr.vmem [resolvable:$true] %s36
      %42 = dma.hbm_to_vmem [thread:$0]  %s35, 2048, %s37, [#allocation6], 128, 128, 8
    $region9: #{tpu_custom_call.1} parent=1 // pred_fallthru
      _
    // Predicated region
    $region10: #{tpu_custom_call.1} parent=1 // pred_check
      _
    $region11: #{tpu_custom_call.1} parent=1 // pred_check_branch
      %44 = sbr.rel (0) target = $region13
    $region12: #{tpu_custom_call.1} parent=1 // pred_region
      %46 = vsyncadd [#allocation6], 0
      %s47 = sshll.u32 %s2, 4
      %s48 = int_to_ptr.hbm [resolvable:$true] %s47
      %s49 = sshll.u32 [#allocation7], 4
      %s50 = int_to_ptr.vmem [resolvable:$true] %s49
      %55 = dma.hbm_to_vmem [thread:$0]  %s48, 1024, %s50, [#allocation6], 64, 64, 4
    $region13: #{tpu_custom_call.1} parent=1 // pred_fallthru
      _
    // Predicated region
    $region14: #{tpu_custom_call.1} parent=1 // pred_check
      _
    $region15: #{tpu_custom_call.1} parent=1 // pred_check_branch
      %57 = sbr.rel (0) target = $region17
    $region16: #{tpu_custom_call.1} parent=1 // pred_region
      %59 = vsyncadd [#allocation9], 0
      %s61 = sshll.u32 %s3, 4
      %s62 = int_to_ptr.hbm [resolvable:$true] %s61
      %s63 = sshll.u32 [#allocation8], 4
      %s64 = int_to_ptr.vmem [resolvable:$true] %s63
      %66 = dma.hbm_to_vmem [thread:$0]  %s62, 256, %s64, [#allocation9]
    $region17: #{tpu_custom_call.1} parent=1 // pred_fallthru
      _
    // Predicated region
    $region18: #{tpu_custom_call.1} parent=1 // pred_check
      _
    $region19: #{tpu_custom_call.1} parent=1 // pred_check_branch
      %68 = sbr.rel (0) target = $region21
    $region20: #{tpu_custom_call.1} parent=1 // pred_region
      %70 = vsyncadd [#allocation9], 0
      %s71 = sshll.u32 %s4, 4
      %s72 = int_to_ptr.hbm [resolvable:$true] %s71
      %s73 = sshll.u32 [#allocation10], 4
      %s74 = int_to_ptr.vmem [resolvable:$true] %s73
      %79 = dma.hbm_to_vmem [thread:$0]  %s72, 2048, %s74, [#allocation9], 128, 128, 8
    $region21: #{tpu_custom_call.1} parent=1 // pred_fallthru
      _
    // Predicated region
    $region22: #{tpu_custom_call.1} parent=1 // pred_check
      _
    $region23: #{tpu_custom_call.1} parent=1 // pred_check_branch
      %81 = sbr.rel (0) target = $region25
    $region24: #{tpu_custom_call.1} parent=1 // pred_region
      %83 = vsyncadd [#allocation12], 0
      %s84 = sshll.u32 %s5, 4
      %s85 = int_to_ptr.hbm [resolvable:$true] %s84
      %s86 = sshll.u32 [#allocation11], 4
      %s87 = int_to_ptr.vmem [resolvable:$true] %s86
      %92 = dma.hbm_to_vmem [thread:$0]  %s85, 1024, %s87, [#allocation12], 64, 64, 4
    $region25: #{tpu_custom_call.1} parent=1 // pred_fallthru
      _
    // Predicated region
    $region26: #{tpu_custom_call.1} parent=1 // pred_check
      _
    $region27: #{tpu_custom_call.1} parent=1 // pred_check_branch
      %94 = sbr.rel (0) target = $region29
    $region28: #{tpu_custom_call.1} parent=1 // pred_region
      %96 = vsyncadd [#allocation12], 0
      %s98 = sshll.u32 %s6, 4
      %s99 = int_to_ptr.hbm [resolvable:$true] %s98
      %s100 = sshll.u32 [#allocation13], 4
      %s101 = int_to_ptr.vmem [resolvable:$true] %s100
      %103 = dma.hbm_to_vmem [thread:$0]  %s99, 256, %s101, [#allocation12]
    $region29: #{tpu_custom_call.1} parent=1 // pred_fallthru
      _
    // Predicated region
    $region30: #{tpu_custom_call.1} parent=1 // pred_check
      _
    $region31: #{tpu_custom_call.1} parent=1 // pred_check_branch
      %105 = sbr.rel (0) target = $region33
    $region32: #{tpu_custom_call.1} parent=1 // pred_region
      %107 = vsyncadd [#allocation15], 0
      %s108 = sshll.u32 %s7, 4
      %s109 = int_to_ptr.hbm [resolvable:$true] %s108
      %s110 = sshll.u32 [#allocation14], 4
      %s111 = int_to_ptr.vmem [resolvable:$true] %s110
      %116 = dma.hbm_to_vmem [thread:$0]  %s109, 1024, %s111, [#allocation15], 64, 64, 4
    $region33: #{tpu_custom_call.1} parent=1 // pred_fallthru
      _
    // Predicated region
    $region34: #{tpu_custom_call.1} parent=1 // pred_check
      _
    $region35: #{tpu_custom_call.1} parent=1 // pred_check_branch
      %118 = sbr.rel (0) target = $region37
    $region36: #{tpu_custom_call.1} parent=1 // pred_region
      %120 = dma.done [#allocation3], 128
    $region37: #{tpu_custom_call.1} parent=1 // pred_fallthru
      _
    // Predicated region
    $region38: #{tpu_custom_call.1} parent=1 // pred_check
      _
    $region39: #{tpu_custom_call.1} parent=1 // pred_check_branch
      %122 = sbr.rel (0) target = $region41
    $region40: #{tpu_custom_call.1} parent=1 // pred_region
      %124 = dma.done [#allocation6], 2048
    $region41: #{tpu_custom_call.1} parent=1 // pred_fallthru
      _
    // Predicated region
    $region42: #{tpu_custom_call.1} parent=1 // pred_check
      _
    $region43: #{tpu_custom_call.1} parent=1 // pred_check_branch
      %126 = sbr.rel (0) target = $region45
    $region44: #{tpu_custom_call.1} parent=1 // pred_region
      %128 = dma.done [#allocation6], 1024
    $region45: #{tpu_custom_call.1} parent=1 // pred_fallthru
      _
    // Predicated region
    $region46: #{tpu_custom_call.1} parent=1 // pred_check
      _
    $region47: #{tpu_custom_call.1} parent=1 // pred_check_branch
      %130 = sbr.rel (0) target = $region49
    $region48: #{tpu_custom_call.1} parent=1 // pred_region
      %132 = dma.done [#allocation9], 256
    $region49: #{tpu_custom_call.1} parent=1 // pred_fallthru
      _
    // Predicated region
    $region50: #{tpu_custom_call.1} parent=1 // pred_check
      _
    $region51: #{tpu_custom_call.1} parent=1 // pred_check_branch
      %134 = sbr.rel (0) target = $region53
    $region52: #{tpu_custom_call.1} parent=1 // pred_region
      %136 = dma.done [#allocation9], 2048
    $region53: #{tpu_custom_call.1} parent=1 // pred_fallthru
      _
    // Predicated region
    $region54: #{tpu_custom_call.1} parent=1 // pred_check
      _
    $region55: #{tpu_custom_call.1} parent=1 // pred_check_branch
      %138 = sbr.rel (0) target = $region57
    $region56: #{tpu_custom_call.1} parent=1 // pred_region
      %140 = dma.done [#allocation12], 1024
    $region57: #{tpu_custom_call.1} parent=1 // pred_fallthru
      _
    // Predicated region
    $region58: #{tpu_custom_call.1} parent=1 // pred_check
      _
    $region59: #{tpu_custom_call.1} parent=1 // pred_check_branch
      %142 = sbr.rel (0) target = $region61
    $region60: #{tpu_custom_call.1} parent=1 // pred_region
      %144 = dma.done [#allocation12], 256
    $region61: #{tpu_custom_call.1} parent=1 // pred_fallthru
      _
    // Predicated region
    $region62: #{tpu_custom_call.1} parent=1 // pred_check
      _
    $region63: #{tpu_custom_call.1} parent=1 // pred_check_branch
      %146 = sbr.rel (0) target = $region65
    $region64: #{tpu_custom_call.1} parent=1 // pred_region
      %148 = dma.done [#allocation15], 1024
    $region65: #{tpu_custom_call.1} parent=1 // pred_fallthru
      _
    %v149 = vlaneseq
    %v150 = vand.u32 %v149, 127
    %vm151 = vcmp.lt.s32.totalorder %v150, 16
    %v152 = vsel %vm151, 1, 0
    %v153 = vcvt.s32.f32 %v152
    %vm154 = vcmp.lt.s32.totalorder %v150, 32
    %v155 = vsel %vm154, 1, 0
    %v156 = vcvt.s32.f32 %v155
    %vm157 = vcmp.lt.s32.totalorder %v150, 24
    %v158 = vsel %vm157, 1, 0
    %v159 = vcvt.s32.f32 %v158
    %v160 = vld [vmem:[#allocation2] sm:$0xff]
    %161 = vadd.xlane.f32.xlu0 %v160
    %v162 = vpop.xlane.xlu0 %161
    %v163 = vmul.f32 %v162, 0.0625
    %v164 = vsub.f32 %v160, %v163
    %v165 = vmul.f32 %v164, %v153
    %v166 = vmul.f32 %v165, %v165
    %167 = vadd.xlane.f32.xlu0 %v166
    %v168 = vpop.xlane.xlu0 %167
    %v169 = vmul.f32 %v168, 0.0625
    %v170 = vadd.f32 %v169, 1e-05
    %v171 = vrsqrt.pop %v170
    %v172 = vmul.f32 %v171, %v170
    %v173 = vmul.f32 %v172, %v171
    %v174 = vmul.f32 0.5, %v173
    %v175 = vsub.f32 1.5, %v174
    %v176 = vmul.f32 %v171, %v175
    %vm177 = vweird.f32 %v170
    %vm178 = vweird.f32 %v171
    %vm179 = vmor %vm177, %vm178
    %v180 = vsel %vm179, %v171, %v176
    %v181 = vmul.f32 %v165, %v180
    %v182 = vpack.c.bf16 %v181, %v181
    %v183 = vld [vmem:[#allocation8] ss:$8 sm:$0x3]
    %v184 = vld [vmem:[#allocation8 + $0x1] ss:$0 sm:$0xff]
    %v185 = vld [vmem:[#allocation8 + $0xa] ss:$0 sm:$0xff]
    %v186 = vld [vmem:[#allocation8 + $0xb] ss:$0 sm:$0xff]
    %v187 = vld [vmem:[#allocation8 + $0xc] ss:$0 sm:$0xff]
    %v188 = vld [vmem:[#allocation5] sm:$0xff]
    %v189 = vld [vmem:[#allocation5 + $0x8] sm:$0xff]
    %v190 = vld [vmem:[#allocation5 + $0x10] sm:$0xff]
    %v191 = vld [vmem:[#allocation5 + $0x18] sm:$0xff]
    %v192 = vld [vmem:[#allocation5 + $0x20] sm:$0xff]
    %v193 = vld [vmem:[#allocation5 + $0x28] sm:$0xff]
    %v194 = vld [vmem:[#allocation5 + $0x30] sm:$0xff]
    %v195 = vld [vmem:[#allocation5 + $0x38] sm:$0xff]
    %v196 = vld [vmem:[#allocation5 + $0x40] sm:$0xff]
    %v197 = vld [vmem:[#allocation5 + $0x48] sm:$0xff]
    %v198 = vld [vmem:[#allocation5 + $0x50] sm:$0xff]
    %v199 = vld [vmem:[#allocation5 + $0x58] sm:$0xff]
    %v200 = vld [vmem:[#allocation5 + $0x60] sm:$0xff]
    %v201 = vld [vmem:[#allocation5 + $0x68] sm:$0xff]
    %v202 = vld [vmem:[#allocation5 + $0x70] sm:$0xff]
    %v203 = vld [vmem:[#allocation5 + $0x78] sm:$0xff]
    %v205 = vperm.slane %v183, 0
    %v206 = vperm.slane %v183, 1
    %v225 = vunpack.c.l.b16 %v188
    %v226 = vunpack.c.h.b16 %v188
    %v227 = vunpack.c.l.b16 %v189
    %v228 = vunpack.c.h.b16 %v189
    %v229 = vunpack.c.l.b16 %v190
    %v230 = vunpack.c.h.b16 %v190
    %v231 = vunpack.c.l.b16 %v191
    %v232 = vunpack.c.h.b16 %v191
    %v233 = vunpack.c.l.b16 %v192
    %v234 = vunpack.c.h.b16 %v192
    %v235 = vunpack.c.l.b16 %v193
    %v236 = vunpack.c.h.b16 %v193
    %v237 = vunpack.c.l.b16 %v194
    %v238 = vunpack.c.h.b16 %v194
    %v239 = vunpack.c.l.b16 %v195
    %v240 = vunpack.c.h.b16 %v195
    %v241 = vunpack.c.l.b16 %v196
    %v242 = vunpack.c.h.b16 %v196
    %v243 = vunpack.c.l.b16 %v197
    %v244 = vunpack.c.h.b16 %v197
    %v245 = vunpack.c.l.b16 %v198
    %v246 = vunpack.c.h.b16 %v198
    %v247 = vunpack.c.l.b16 %v199
    %v248 = vunpack.c.h.b16 %v199
    %v249 = vunpack.c.l.b16 %v200
    %v250 = vunpack.c.h.b16 %v200
    %v251 = vunpack.c.l.b16 %v201
    %v252 = vunpack.c.h.b16 %v201
    %v253 = vunpack.c.l.b16 %v202
    %v254 = vunpack.c.h.b16 %v202
    %v255 = vunpack.c.l.b16 %v203
    %v256 = vunpack.c.h.b16 %v203
    %v257 = vpack.c.b16 %v227, %v225
    %v258 = vpack.c.b16 %v228, %v226
    %v259 = vpack.c.b16 %v231, %v229
    %v260 = vpack.c.b16 %v232, %v230
    %v261 = vpack.c.b16 %v235, %v233
    %v262 = vpack.c.b16 %v236, %v234
    %v263 = vpack.c.b16 %v239, %v237
    %v264 = vpack.c.b16 %v240, %v238
    %v265 = vpack.c.b16 %v243, %v241
    %v266 = vpack.c.b16 %v244, %v242
    %v267 = vpack.c.b16 %v247, %v245
    %v268 = vpack.c.b16 %v248, %v246
    %v269 = vpack.c.b16 %v251, %v249
    %v270 = vpack.c.b16 %v252, %v250
    %v271 = vpack.c.b16 %v255, %v253
    %v272 = vpack.c.b16 %v256, %v254
    %289 = vmatpush.bf16.msra.mxu0 %v271
    %290 = vmatpush.bf16.msra.mxu0 %v269
    %291 = vmatpush.bf16.msra.mxu0 %v267
    %292 = vmatpush.bf16.msra.mxu0 %v265
    %293 = vmatpush.bf16.msra.mxu0 %v263
    %294 = vmatpush.bf16.msra.mxu0 %v261
    %295 = vmatpush.bf16.msra.mxu0 %v259
    %296 = vmatpush.bf16.msra.mxu0 %v257
    %297 = vmatmul.bf16.gmra.mxu0 %v182
    %v298 = vpop.f32.mrf.mxu0
    %v299 = vadd.f32 %v205, %v298
    %v300 = vpop.f32.mrf.mxu0
    %301 = vdwg.mxu0
    %302 = vmatpush.bf16.msra.mxu0 %v272
    %303 = vmatpush.bf16.msra.mxu0 %v270
    %304 = vmatpush.bf16.msra.mxu0 %v268
    %305 = vmatpush.bf16.msra.mxu0 %v266
    %306 = vmatpush.bf16.msra.mxu0 %v264
    %307 = vmatpush.bf16.msra.mxu0 %v262
    %308 = vmatpush.bf16.msra.mxu0 %v260
    %309 = vmatpush.bf16.msra.mxu0 %v258
    %310 = vmatmul.bf16.gmra.mxu0 %v182
    %v311 = vpop.f32.mrf.mxu0
    %v312 = vadd.f32 %v206, %v311
    %v313 = vpop.f32.mrf.mxu0
    %314 = vdwg.mxu0
    %v315 = vsub.f32 %v312, %v186
    %v316 = vmul.f32 %v315, %v185
    %vm317 = vcmp.ge.f32.partialorder %v316, 0.0
    %vm318 = vcmp.lt.f32.partialorder %v316, 1.0
    %vm319 = vmand %vm317, %vm318
    %vm320 = vcmp.lt.f32.partialorder %v316, 0.5
    %v321 = vsel %vm320, 0.8413448, -0.15865526
    %v322 = vsel %vm319, %v321, 0.0
    %v323 = vmul.f32 %v187, %v322
    %v324 = vpack.c.bf16 %v323, %v323
    %v325 = vld [vmem:[#allocation7] sm:$0xf]
    %v326 = vld [vmem:[#allocation7 + $0x4] sm:$0xf]
    %v327 = vld [vmem:[#allocation7 + $0x8] sm:$0xf]
    %v328 = vld [vmem:[#allocation7 + $0xc] sm:$0xf]
    %v329 = vld [vmem:[#allocation7 + $0x10] sm:$0xf]
    %v330 = vld [vmem:[#allocation7 + $0x14] sm:$0xf]
    %v331 = vld [vmem:[#allocation7 + $0x18] sm:$0xf]
    %v332 = vld [vmem:[#allocation7 + $0x1c] sm:$0xf]
    %v333 = vld [vmem:[#allocation7 + $0x20] sm:$0xf]
    %v334 = vld [vmem:[#allocation7 + $0x24] sm:$0xf]
    %v335 = vld [vmem:[#allocation7 + $0x28] sm:$0xf]
    %v336 = vld [vmem:[#allocation7 + $0x2c] sm:$0xf]
    %v337 = vld [vmem:[#allocation7 + $0x30] sm:$0xf]
    %v338 = vld [vmem:[#allocation7 + $0x34] sm:$0xf]
    %v339 = vld [vmem:[#allocation7 + $0x38] sm:$0xf]
    %v340 = vld [vmem:[#allocation7 + $0x3c] sm:$0xf]
    %v357 = vunpack.c.l.b16 %v325
    %v358 = vunpack.c.l.b16 %v326
    %v359 = vunpack.c.l.b16 %v327
    %v360 = vunpack.c.l.b16 %v328
    %v361 = vunpack.c.l.b16 %v329
    %v362 = vunpack.c.l.b16 %v330
    %v363 = vunpack.c.l.b16 %v331
    %v364 = vunpack.c.l.b16 %v332
    %v365 = vunpack.c.l.b16 %v333
    %v366 = vunpack.c.l.b16 %v334
    %v367 = vunpack.c.l.b16 %v335
    %v368 = vunpack.c.l.b16 %v336
    %v369 = vunpack.c.l.b16 %v337
    %v370 = vunpack.c.l.b16 %v338
    %v371 = vunpack.c.l.b16 %v339
    %v372 = vunpack.c.l.b16 %v340
    %v373 = vpack.c.b16 %v358, %v357
    %v374 = vpack.c.b16 %v360, %v359
    %v375 = vpack.c.b16 %v362, %v361
    %v376 = vpack.c.b16 %v364, %v363
    %v377 = vpack.c.b16 %v366, %v365
    %v378 = vpack.c.b16 %v368, %v367
    %v379 = vpack.c.b16 %v370, %v369
    %v380 = vpack.c.b16 %v372, %v371
    %389 = vmatpush.bf16.msra.mxu0 %v380
    %390 = vmatpush.bf16.msra.mxu0 %v379
    %391 = vmatpush.bf16.msra.mxu0 %v378
    %392 = vmatpush.bf16.msra.mxu0 %v377
    %393 = vmatpush.bf16.msra.mxu0 %v376
    %394 = vmatpush.bf16.msra.mxu0 %v375
    %395 = vmatpush.bf16.msra.mxu0 %v374
    %396 = vmatpush.bf16.msra.mxu0 %v373
    %397 = vmatmul.bf16.gmra.mxu0 %v324
    %v398 = vpop.f32.mrf.mxu0
    %v399 = vadd.f32 %v184, %v398
    %v400 = vpop.f32.mrf.mxu0
    %401 = vdwg.mxu0
    %v402 = vadd.f32 %v299, %v399
    %403 = vadd.xlane.f32.xlu0 %v402
    %v404 = vpop.xlane.xlu0 %403
    %v405 = vmul.f32 %v404, 0.03125
    %v406 = vsub.f32 %v402, %v405
    %v407 = vmul.f32 %v406, %v156
    %v408 = vmul.f32 %v407, %v407
    %409 = vadd.xlane.f32.xlu0 %v408
    %v410 = vpop.xlane.xlu0 %409
    %v411 = vmul.f32 %v410, 0.03125
    %v412 = vadd.f32 %v411, 1e-05
    %v413 = vrsqrt.pop %v412
    %v414 = vmul.f32 %v413, %v412
    %v415 = vmul.f32 %v414, %v413
    %v416 = vmul.f32 0.5, %v415
    %v417 = vsub.f32 1.5, %v416
    %v418 = vmul.f32 %v413, %v417
    %vm419 = vweird.f32 %v412
    %vm420 = vweird.f32 %v413
    %vm421 = vmor %vm419, %vm420
    %v422 = vsel %vm421, %v413, %v418
    %v423 = vmul.f32 %v407, %v422
    %v424 = vmul.f32 %v423, 0.5
    %v425 = vmul.f32 %v423, 0.70710677
    %vm426 = vcmp.ge.f32.partialorder %v425, 0.0
    %v427 = vsel %vm426, 1.0, -1.0
    %v428 = vand.u32 2147483647, %v425
    %v429 = vmul.f32 %v428, 0.3275911
    %v430 = vadd.f32 %v429, 1.0
    %v431 = vrcp.pop %v430
    %v432 = vmul.f32 %v430, %v431
    %v433 = vsub.f32 2.0, %v432
    %v434 = vmul.f32 %v431, %v433
    %v435 = vmul.f32 %v434, 1.0614054
    %v436 = vadd.f32 %v435, -1.4531521
    %v437 = vmul.f32 %v436, %v434
    %v438 = vadd.f32 %v437, 1.4214138
    %v439 = vmul.f32 %v438, %v434
    %v440 = vadd.f32 %v439, -0.28449672
    %v441 = vmul.f32 %v440, %v434
    %v442 = vadd.f32 %v441, 0.2548296
    %v443 = vmul.f32 %v442, %v434
    %v444 = vsub.f32 0.0, %v428
    %v445 = vmul.f32 %v444, %v428
    %v446 = vmul.f32 %v445, 1.442695
    %v447 = vpow.pop %v446
    %v448 = vmul.f32 %v443, %v447
    %v449 = vsub.f32 1.0, %v448
    %v450 = vmul.f32 %v427, %v449
    %v451 = vadd.f32 %v450, 1.0
    %v452 = vmul.f32 %v424, %v451
    %453 = vadd.xlane.f32.xlu0 %v452
    %v454 = vpop.xlane.xlu0 %453
    %v455 = vmul.f32 %v454, 0.03125
    %v456 = vsub.f32 %v452, %v455
    %v457 = vmul.f32 %v456, %v156
    %v458 = vmul.f32 %v457, %v457
    %459 = vadd.xlane.f32.xlu0 %v458
    %v460 = vpop.xlane.xlu0 %459
    %v461 = vmul.f32 %v460, 0.03125
    %v462 = vadd.f32 %v461, 1e-05
    %v463 = vrsqrt.pop %v462
    %v464 = vmul.f32 %v463, %v462
    %v465 = vmul.f32 %v464, %v463
    %v466 = vmul.f32 0.5, %v465
    %v467 = vsub.f32 1.5, %v466
    %v468 = vmul.f32 %v463, %v467
    %vm469 = vweird.f32 %v462
    %vm470 = vweird.f32 %v463
    %vm471 = vmor %vm469, %vm470
    %v472 = vsel %vm471, %v463, %v468
    %v473 = vmul.f32 %v457, %v472
    %v474 = vpack.c.bf16 %v473, %v473
    %v475 = vld [vmem:[#allocation13] ss:$8 sm:$0x3]
    %v476 = vld [vmem:[#allocation13 + $0x1] ss:$0 sm:$0xff]
    %v477 = vld [vmem:[#allocation13 + $0xa] ss:$0 sm:$0xff]
    %v478 = vld [vmem:[#allocation13 + $0xb] ss:$0 sm:$0xff]
    %v479 = vld [vmem:[#allocation13 + $0xc] ss:$0 sm:$0xff]
    %v480 = vld [vmem:[#allocation10] sm:$0xff]
    %v481 = vld [vmem:[#allocation10 + $0x8] sm:$0xff]
    %v482 = vld [vmem:[#allocation10 + $0x10] sm:$0xff]
    %v483 = vld [vmem:[#allocation10 + $0x18] sm:$0xff]
    %v484 = vld [vmem:[#allocation10 + $0x20] sm:$0xff]
    %v485 = vld [vmem:[#allocation10 + $0x28] sm:$0xff]
    %v486 = vld [vmem:[#allocation10 + $0x30] sm:$0xff]
    %v487 = vld [vmem:[#allocation10 + $0x38] sm:$0xff]
    %v488 = vld [vmem:[#allocation10 + $0x40] sm:$0xff]
    %v489 = vld [vmem:[#allocation10 + $0x48] sm:$0xff]
    %v490 = vld [vmem:[#allocation10 + $0x50] sm:$0xff]
    %v491 = vld [vmem:[#allocation10 + $0x58] sm:$0xff]
    %v492 = vld [vmem:[#allocation10 + $0x60] sm:$0xff]
    %v493 = vld [vmem:[#allocation10 + $0x68] sm:$0xff]
    %v494 = vld [vmem:[#allocation10 + $0x70] sm:$0xff]
    %v495 = vld [vmem:[#allocation10 + $0x78] sm:$0xff]
    %v497 = vperm.slane %v475, 0
    %v498 = vperm.slane %v475, 1
    %v517 = vunpack.c.l.b16 %v480
    %v518 = vunpack.c.h.b16 %v480
    %v519 = vunpack.c.l.b16 %v481
    %v520 = vunpack.c.h.b16 %v481
    %v521 = vunpack.c.l.b16 %v482
    %v522 = vunpack.c.h.b16 %v482
    %v523 = vunpack.c.l.b16 %v483
    %v524 = vunpack.c.h.b16 %v483
    %v525 = vunpack.c.l.b16 %v484
    %v526 = vunpack.c.h.b16 %v484
    %v527 = vunpack.c.l.b16 %v485
    %v528 = vunpack.c.h.b16 %v485
    %v529 = vunpack.c.l.b16 %v486
    %v530 = vunpack.c.h.b16 %v486
    %v531 = vunpack.c.l.b16 %v487
    %v532 = vunpack.c.h.b16 %v487
    %v533 = vunpack.c.l.b16 %v488
    %v534 = vunpack.c.h.b16 %v488
    %v535 = vunpack.c.l.b16 %v489
    %v536 = vunpack.c.h.b16 %v489
    %v537 = vunpack.c.l.b16 %v490
    %v538 = vunpack.c.h.b16 %v490
    %v539 = vunpack.c.l.b16 %v491
    %v540 = vunpack.c.h.b16 %v491
    %v541 = vunpack.c.l.b16 %v492
    %v542 = vunpack.c.h.b16 %v492
    %v543 = vunpack.c.l.b16 %v493
    %v544 = vunpack.c.h.b16 %v493
    %v545 = vunpack.c.l.b16 %v494
    %v546 = vunpack.c.h.b16 %v494
    %v547 = vunpack.c.l.b16 %v495
    %v548 = vunpack.c.h.b16 %v495
    %v549 = vpack.c.b16 %v519, %v517
    %v550 = vpack.c.b16 %v520, %v518
    %v551 = vpack.c.b16 %v523, %v521
    %v552 = vpack.c.b16 %v524, %v522
    %v553 = vpack.c.b16 %v527, %v525
    %v554 = vpack.c.b16 %v528, %v526
    %v555 = vpack.c.b16 %v531, %v529
    %v556 = vpack.c.b16 %v532, %v530
    %v557 = vpack.c.b16 %v535, %v533
    %v558 = vpack.c.b16 %v536, %v534
    %v559 = vpack.c.b16 %v539, %v537
    %v560 = vpack.c.b16 %v540, %v538
    %v561 = vpack.c.b16 %v543, %v541
    %v562 = vpack.c.b16 %v544, %v542
    %v563 = vpack.c.b16 %v547, %v545
    %v564 = vpack.c.b16 %v548, %v546
    %581 = vmatpush.bf16.msra.mxu0 %v563
    %582 = vmatpush.bf16.msra.mxu0 %v561
    %583 = vmatpush.bf16.msra.mxu0 %v559
    %584 = vmatpush.bf16.msra.mxu0 %v557
    %585 = vmatpush.bf16.msra.mxu0 %v555
    %586 = vmatpush.bf16.msra.mxu0 %v553
    %587 = vmatpush.bf16.msra.mxu0 %v551
    %588 = vmatpush.bf16.msra.mxu0 %v549
    %589 = vmatmul.bf16.gmra.mxu0 %v474
    %v590 = vpop.f32.mrf.mxu0
    %v591 = vadd.f32 %v497, %v590
    %v592 = vpop.f32.mrf.mxu0
    %593 = vdwg.mxu0
    %594 = vmatpush.bf16.msra.mxu0 %v564
    %595 = vmatpush.bf16.msra.mxu0 %v562
    %596 = vmatpush.bf16.msra.mxu0 %v560
    %597 = vmatpush.bf16.msra.mxu0 %v558
    %598 = vmatpush.bf16.msra.mxu0 %v556
    %599 = vmatpush.bf16.msra.mxu0 %v554
    %600 = vmatpush.bf16.msra.mxu0 %v552
    %601 = vmatpush.bf16.msra.mxu0 %v550
    %602 = vmatmul.bf16.gmra.mxu0 %v474
    %v603 = vpop.f32.mrf.mxu0
    %v604 = vadd.f32 %v498, %v603
    %v605 = vpop.f32.mrf.mxu0
    %606 = vdwg.mxu0
    %v607 = vsub.f32 %v604, %v478
    %v608 = vmul.f32 %v607, %v477
    %vm609 = vcmp.ge.f32.partialorder %v608, 0.0
    %vm610 = vcmp.lt.f32.partialorder %v608, 1.0
    %vm611 = vmand %vm609, %vm610
    %vm612 = vcmp.lt.f32.partialorder %v608, 0.5
    %v613 = vsel %vm612, 0.8413448, -0.15865526
    %v614 = vsel %vm611, %v613, 0.0
    %v615 = vmul.f32 %v479, %v614
    %v616 = vpack.c.bf16 %v615, %v615
    %v617 = vld [vmem:[#allocation11] sm:$0xf]
    %v618 = vld [vmem:[#allocation11 + $0x4] sm:$0xf]
    %v619 = vld [vmem:[#allocation11 + $0x8] sm:$0xf]
    %v620 = vld [vmem:[#allocation11 + $0xc] sm:$0xf]
    %v621 = vld [vmem:[#allocation11 + $0x10] sm:$0xf]
    %v622 = vld [vmem:[#allocation11 + $0x14] sm:$0xf]
    %v623 = vld [vmem:[#allocation11 + $0x18] sm:$0xf]
    %v624 = vld [vmem:[#allocation11 + $0x1c] sm:$0xf]
    %v625 = vld [vmem:[#allocation11 + $0x20] sm:$0xf]
    %v626 = vld [vmem:[#allocation11 + $0x24] sm:$0xf]
    %v627 = vld [vmem:[#allocation11 + $0x28] sm:$0xf]
    %v628 = vld [vmem:[#allocation11 + $0x2c] sm:$0xf]
    %v629 = vld [vmem:[#allocation11 + $0x30] sm:$0xf]
    %v630 = vld [vmem:[#allocation11 + $0x34] sm:$0xf]
    %v631 = vld [vmem:[#allocation11 + $0x38] sm:$0xf]
    %v632 = vld [vmem:[#allocation11 + $0x3c] sm:$0xf]
    %v649 = vunpack.c.l.b16 %v617
    %v650 = vunpack.c.l.b16 %v618
    %v651 = vunpack.c.l.b16 %v619
    %v652 = vunpack.c.l.b16 %v620
    %v653 = vunpack.c.l.b16 %v621
    %v654 = vunpack.c.l.b16 %v622
    %v655 = vunpack.c.l.b16 %v623
    %v656 = vunpack.c.l.b16 %v624
    %v657 = vunpack.c.l.b16 %v625
    %v658 = vunpack.c.l.b16 %v626
    %v659 = vunpack.c.l.b16 %v627
    %v660 = vunpack.c.l.b16 %v628
    %v661 = vunpack.c.l.b16 %v629
    %v662 = vunpack.c.l.b16 %v630
    %v663 = vunpack.c.l.b16 %v631
    %v664 = vunpack.c.l.b16 %v632
    %v665 = vpack.c.b16 %v650, %v649
    %v666 = vpack.c.b16 %v652, %v651
    %v667 = vpack.c.b16 %v654, %v653
    %v668 = vpack.c.b16 %v656, %v655
    %v669 = vpack.c.b16 %v658, %v657
    %v670 = vpack.c.b16 %v660, %v659
    %v671 = vpack.c.b16 %v662, %v661
    %v672 = vpack.c.b16 %v664, %v663
    %681 = vmatpush.bf16.msra.mxu0 %v672
    %682 = vmatpush.bf16.msra.mxu0 %v671
    %683 = vmatpush.bf16.msra.mxu0 %v670
    %684 = vmatpush.bf16.msra.mxu0 %v669
    %685 = vmatpush.bf16.msra.mxu0 %v668
    %686 = vmatpush.bf16.msra.mxu0 %v667
    %687 = vmatpush.bf16.msra.mxu0 %v666
    %688 = vmatpush.bf16.msra.mxu0 %v665
    %689 = vmatmul.bf16.gmra.mxu0 %v616
    %v690 = vpop.f32.mrf.mxu0
    %v691 = vadd.f32 %v476, %v690
    %v692 = vpop.f32.mrf.mxu0
    %693 = vdwg.mxu0
    %v694 = vadd.f32 %v591, %v691
    %695 = vadd.xlane.f32.xlu0 %v694
    %v696 = vpop.xlane.xlu0 %695
    %v697 = vmul.f32 %v696, 0.041666668
    %v698 = vsub.f32 %v694, %v697
    %v699 = vmul.f32 %v698, %v159
    %v700 = vmul.f32 %v699, %v699
    %701 = vadd.xlane.f32.xlu0 %v700
    %v702 = vpop.xlane.xlu0 %701
    %v703 = vmul.f32 %v702, 0.041666668
    %v704 = vadd.f32 %v703, 1e-05
    %v705 = vrsqrt.pop %v704
    %v706 = vmul.f32 %v705, %v704
    %v707 = vmul.f32 %v706, %v705
    %v708 = vmul.f32 0.5, %v707
    %v709 = vsub.f32 1.5, %v708
    %v710 = vmul.f32 %v705, %v709
    %vm711 = vweird.f32 %v704
    %vm712 = vweird.f32 %v705
    %vm713 = vmor %vm711, %vm712
    %v714 = vsel %vm713, %v705, %v710
    %v715 = vmul.f32 %v699, %v714
    %v716 = vpack.c.bf16 %v160, %v160
    %v717 = vld [vmem:[#allocation14] sm:$0xf]
    %v718 = vld [vmem:[#allocation14 + $0x4] sm:$0xf]
    %v719 = vld [vmem:[#allocation14 + $0x8] sm:$0xf]
    %v720 = vld [vmem:[#allocation14 + $0xc] sm:$0xf]
    %v721 = vld [vmem:[#allocation14 + $0x10] sm:$0xf]
    %v722 = vld [vmem:[#allocation14 + $0x14] sm:$0xf]
    %v723 = vld [vmem:[#allocation14 + $0x18] sm:$0xf]
    %v724 = vld [vmem:[#allocation14 + $0x1c] sm:$0xf]
    %v725 = vld [vmem:[#allocation14 + $0x20] sm:$0xf]
    %v726 = vld [vmem:[#allocation14 + $0x24] sm:$0xf]
    %v727 = vld [vmem:[#allocation14 + $0x28] sm:$0xf]
    %v728 = vld [vmem:[#allocation14 + $0x2c] sm:$0xf]
    %v729 = vld [vmem:[#allocation14 + $0x30] sm:$0xf]
    %v730 = vld [vmem:[#allocation14 + $0x34] sm:$0xf]
    %v731 = vld [vmem:[#allocation14 + $0x38] sm:$0xf]
    %v732 = vld [vmem:[#allocation14 + $0x3c] sm:$0xf]
    %v733 = vld [vmem:[#allocation13 + $0x5] ss:$0 sm:$0xff]
    %v750 = vunpack.c.l.b16 %v717
    %v751 = vunpack.c.l.b16 %v718
    %v752 = vunpack.c.l.b16 %v719
    %v753 = vunpack.c.l.b16 %v720
    %v754 = vunpack.c.l.b16 %v721
    %v755 = vunpack.c.l.b16 %v722
    %v756 = vunpack.c.l.b16 %v723
    %v757 = vunpack.c.l.b16 %v724
    %v758 = vunpack.c.l.b16 %v725
    %v759 = vunpack.c.l.b16 %v726
    %v760 = vunpack.c.l.b16 %v727
    %v761 = vunpack.c.l.b16 %v728
    %v762 = vunpack.c.l.b16 %v729
    %v763 = vunpack.c.l.b16 %v730
    %v764 = vunpack.c.l.b16 %v731
    %v765 = vunpack.c.l.b16 %v732
    %v766 = vpack.c.b16 %v751, %v750
    %v767 = vpack.c.b16 %v753, %v752
    %v768 = vpack.c.b16 %v755, %v754
    %v769 = vpack.c.b16 %v757, %v756
    %v770 = vpack.c.b16 %v759, %v758
    %v771 = vpack.c.b16 %v761, %v760
    %v772 = vpack.c.b16 %v763, %v762
    %v773 = vpack.c.b16 %v765, %v764
    %782 = vmatpush.bf16.msra.mxu0 %v773
    %783 = vmatpush.bf16.msra.mxu0 %v772
    %784 = vmatpush.bf16.msra.mxu0 %v771
    %785 = vmatpush.bf16.msra.mxu0 %v770
    %786 = vmatpush.bf16.msra.mxu0 %v769
    %787 = vmatpush.bf16.msra.mxu0 %v768
    %788 = vmatpush.bf16.msra.mxu0 %v767
    %789 = vmatpush.bf16.msra.mxu0 %v766
    %790 = vmatmul.bf16.gmra.mxu0 %v716
    %v791 = vpop.f32.mrf.mxu0
    %v792 = vadd.f32 %v733, %v791
    %v793 = vpop.f32.mrf.mxu0
    %794 = vdwg.mxu0
    %v795 = vadd.f32 %v715, %v792
    %796 = vst [vmem:[#allocation16] sm:$0xff] %v795
    // Predicated region
    $region66: #{tpu_custom_call.1} parent=1 // pred_check
      _
    $region67: #{tpu_custom_call.1} parent=1 // pred_check_branch
      %798 = sbr.rel (0) target = $region69
    $region68: #{tpu_custom_call.1} parent=1 // pred_region
      %800 = vsyncadd [#allocation4], 0
      %s802 = sshll.u32 [#allocation16], 4
      %s803 = int_to_ptr.vmem [resolvable:$true] %s802
      %s804 = sshll.u32 %s8, 4
      %s805 = int_to_ptr.hbm [resolvable:$true] %s804
      %807 = dma.vmem_to_hbm [thread:$0]  %s803, 128, %s805, [#allocation4]
    $region69: #{tpu_custom_call.1} parent=1 // pred_fallthru
      _
    // Predicated region
    $region70: #{tpu_custom_call.1} parent=1 // pred_check
      _
    $region71: #{tpu_custom_call.1} parent=1 // pred_check_branch
      %809 = sbr.rel (0) target = $region73
    $region72: #{tpu_custom_call.1} parent=1 // pred_region
      %811 = dma.done [#allocation4], 128
    $region73: #{tpu_custom_call.1} parent=1 // pred_fallthru
      _
    %812 = vsyncpa [#allocation3], 1
    %813 = vsyncpa [#allocation6], 1
    %814 = vsyncpa [#allocation9], 1
    %815 = vsyncpa [#allocation12], 1
    %816 = vsyncpa [#allocation15], 1
    %817 = vsyncpa [#allocation4], 1

</llo_original>
